<compile_context>
chip_gen: v7x
topology: tpu7x:2x2x1
jax: 0.10.0
libtpu: 0.0.40
codegen_flags: <defaults>
</compile_context>

<pallas_src>
import functools
import math

import jax
import jax.numpy as jnp
from jax.experimental import pallas as pl
from jax.experimental.pallas import tpu as pltpu


def _silu(x):
    # x * sigmoid(x); sigmoid via EUP exp + reciprocal (keeps VALU slots free).
    return x * pl.reciprocal(1.0 + jnp.exp(-x), approx=False)


def _silu_ref(x):
    return x * jax.nn.sigmoid(x)


def _round_up(x, m):
    return ((x + m - 1) // m) * m


# ---------------------------------------------------------------------------
# Kernel: one grid step = one tile of TE edges.
#   one-hot gather (MXU): edge_pre = onehot_row^T @ P_src + onehot_col^T @ P_dst + b1
#   edge MLP (2nd linear + SiLUs) -> mij tile (stored in compute dtype)
#   one-hot(row) @ mij (MXU) -> (N_pad, H) f32 accumulator in VMEM scratch
#   last tile: node MLP (split contraction, inv_norm folded into w3a) + residual
# ---------------------------------------------------------------------------
def gcl_kernel(row_ref, col_ref, psrc_ref, pdst_ref, h_ref, b1_ref,
               w2_ref, b2_ref, w3h_ref, w3a_ref, b3_ref, w4_ref, b4_ref,
               h_out_ref, mij_ref,
               acc_ref,
               *, compute_dtype):
    cdt = compute_dtype
    e_idx = pl.program_id(0)
    n_pad = acc_ref.shape[0]
    te = mij_ref.shape[0]

    # ---- one-hots for this edge tile (built directly in compute dtype) ------
    row = row_ref[...]                                              # (1, TE) i32
    col = col_ref[...]
    niota = jax.lax.broadcasted_iota(jnp.int32, (n_pad, te), 0)
    oh_row = (niota == row).astype(cdt)                             # (N_pad, TE)
    oh_col = (niota == col).astype(cdt)                             # (N_pad, TE)

    # ---- in-kernel gather of the folded first linear -------------------------
    # edge_pre[e] = P_src[row[e]] + P_dst[col[e]] + b1  (padded edges: ids=-1 -> 0)
    gdims = (((0,), (0,)), ((), ()))                                 # contract node axis
    pre = (jax.lax.dot_general(oh_row, psrc_ref[...], gdims,
                               preferred_element_type=jnp.float32)
           + jax.lax.dot_general(oh_col, pdst_ref[...], gdims,
                                 preferred_element_type=jnp.float32)
           + b1_ref[...])                                           # (TE, H) f32

    # ---- edge MLP ------------------------------------------------------------
    t = _silu(pre)
    mij = _silu(jnp.dot(t.astype(cdt), w2_ref[...],
                        preferred_element_type=jnp.float32) + b2_ref[...])
    mij_c = mij.astype(cdt)
    mij_ref[...] = mij_c                                            # (TE, H) cdt
    # attention=False, edge_mask=None -> edge_feat == mij

    # ---- unsorted_segment_sum ('sum'): one-hot(row) @ mij on the MXU ---------
    contrib = jnp.dot(oh_row, mij_c, preferred_element_type=jnp.float32)

    @pl.when(e_idx == 0)
    def _init():
        acc_ref[...] = contrib

    @pl.when(e_idx != 0)
    def _accum():
        acc_ref[...] += contrib

    # ---- last tile: node MLP + residual ---------------------------------------
    @pl.when(e_idx == pl.num_programs(0) - 1)
    def _finalize():
        agg = acc_ref[...]                                          # (N_pad, H) f32
        hx = h_ref[...]                                             # (N_pad, nf) f32
        # cat([h, agg]) @ w3 == h @ w3_h + agg @ w3_a (inv_norm folded into w3_a)
        u = _silu(jnp.dot(hx.astype(cdt), w3h_ref[...],
                          preferred_element_type=jnp.float32)
                  + jnp.dot(agg.astype(cdt), w3a_ref[...],
                            preferred_element_type=jnp.float32)
                  + b3_ref[...])
        msg = jnp.dot(u.astype(cdt), w4_ref[...],
                      preferred_element_type=jnp.float32) + b4_ref[...]
        h_out_ref[...] = hx + msg                                   # requires out_nf == nf


def gcl_forward(h, row, col, params, *, normalization_factor,
                aggregation_method="sum", compute_dtype=jnp.bfloat16,
                edge_tile=2048):
    """h: (N, nf) f32; row/col: (E,) int32 edge index; params: dict of weights.

    Returns (h_out[:N] f32, mij[:E] in compute_dtype).  Padded mij rows (if the
    caller ever looked at them) contain SiLU(b-derived) garbage; always slice.
    """
    if aggregation_method != "sum":
        raise NotImplementedError("only aggregation_method='sum' is fused")

    n_nodes, nf = h.shape
    n_edges = row.shape[0]
    hidden = params["w2"].shape[0]
    out_nf = params["w4"].shape[1]
    cdt = jnp.dtype(compute_dtype)
    itemsize = cdt.itemsize

    # ---- fold edge_mlp[0] into per-node projections (O(N) work, done once) ---
    w1_src = params["w1"][:nf]                 # multiplies h[row] (source)
    w1_dst = params["w1"][nf:]                 # multiplies h[col] (target)
    p_src = (h @ w1_src).astype(cdt)           # (N, H)
    p_dst = (h @ w1_dst).astype(cdt)

    # ---- padding / tiling ------------------------------------------------------
    n_pad = _round_up(n_nodes, 8)
    # cap TE so the in-kernel (N_pad, TE) iota + 2 one-hot temporaries stay small
    temp_per_col = n_pad * (4 + 2 * itemsize)
    te_cap = max(128, ((6 * 2**20) // temp_per_col) // 128 * 128)
    te = _round_up(min(edge_tile, te_cap, _round_up(n_edges, 128)), 128)
    e_pad = _round_up(n_edges, te)
    n_tiles = e_pad // te

    # padded edges get row/col = -1 -> match no node -> all-zero one-hot columns
    row_ids = jnp.pad(row.astype(jnp.int32), (0, e_pad - n_edges),
                      constant_values=-1).reshape(1, e_pad)
    col_ids = jnp.pad(col.astype(jnp.int32), (0, e_pad - n_edges),
                      constant_values=-1).reshape(1, e_pad)
    p_src = jnp.pad(p_src, ((0, n_pad - n_nodes), (0, 0)))
    p_dst = jnp.pad(p_dst, ((0, n_pad - n_nodes), (0, 0)))
    h_p = jnp.pad(h, ((0, n_pad - n_nodes), (0, 0)))

    # MXU operands in compute dtype; biases / accumulation / residual stay f32.
    w2 = params["w2"].astype(cdt)
    w3h = params["w3"][:nf].astype(cdt)                 # concat order is [h, agg]
    w3a = (params["w3"][nf:] / normalization_factor).astype(cdt)   # fold 'sum' norm
    w4 = params["w4"].astype(cdt)
    b1, b2, b3, b4 = params["b1"], params["b2"], params["b3"], params["b4"]

    kernel = functools.partial(gcl_kernel, compute_dtype=cdt)

    const = lambda e: (0, 0)
    in_specs = [
        pl.BlockSpec((1, te), lambda e: (0, e)),        # row ids (streamed)
        pl.BlockSpec((1, te), lambda e: (0, e)),        # col ids (streamed)
        pl.BlockSpec((n_pad, hidden), const),           # P_src   (resident)
        pl.BlockSpec((n_pad, hidden), const),           # P_dst   (resident)
        pl.BlockSpec((n_pad, nf), const),               # h       (resident)
        pl.BlockSpec((1, hidden), const),               # b1
        pl.BlockSpec((hidden, hidden), const),          # w2
        pl.BlockSpec((1, hidden), const),               # b2
        pl.BlockSpec((nf, hidden), const),              # w3_h
        pl.BlockSpec((hidden, hidden), const),          # w3_a (pre-scaled)
        pl.BlockSpec((1, hidden), const),               # b3
        pl.BlockSpec((hidden, out_nf), const),          # w4
        pl.BlockSpec((1, out_nf), const),               # b4
    ]
    out_specs = (
        pl.BlockSpec((n_pad, out_nf), const),           # h_out (resident)
        pl.BlockSpec((te, hidden), lambda e: (e, 0)),   # mij   (streamed, cdt)
    )

    # ---- VMEM budget: residents + double-buffered streams + in-kernel temps ----
    weight_bytes = (itemsize * (2 * hidden * hidden + nf * hidden + hidden * out_nf)
                    + 4 * (3 * hidden + out_nf))
    resident = (itemsize * 2 * n_pad * hidden                     # P_src / P_dst
                + 4 * n_pad * (nf + hidden + out_nf)              # h, acc, h_out
                + weight_bytes)
    streamed = 2 * (2 * 4 * te + itemsize * te * hidden)          # ids + mij, x2 bufs
    temps = n_pad * te * (4 + 2 * itemsize) + 4 * 4 * te * hidden # iota, one-hots, f32
    vmem_limit = int(min(max(16 * 2**20, 2 * (resident + streamed + temps)),
                         64 * 2**20))

    flops = (2 * e_pad * n_pad * hidden * 3            # gather (row,col) + scatter
             + 2 * e_pad * hidden * hidden             # edge MLP 2nd linear
             + 2 * n_pad * (nf + hidden) * hidden      # node MLP 1st linear (split)
             + 2 * n_pad * hidden * out_nf)            # node MLP 2nd linear
    transcendentals = 2 * e_pad * hidden + n_pad * hidden
    bytes_accessed = (2 * 4 * e_pad                    # row/col ids
                      + itemsize * e_pad * hidden      # mij out
                      + itemsize * 2 * n_pad * hidden  # P_src / P_dst
                      + 4 * n_pad * (nf + out_nf)      # h in, h_out out
                      + weight_bytes)

    h_out_p, mij_p = pl.pallas_call(
        kernel,
        out_shape=(jax.ShapeDtypeStruct((n_pad, out_nf), jnp.float32),
                   jax.ShapeDtypeStruct((e_pad, hidden), cdt)),
        grid=(n_tiles,),
        in_specs=in_specs,
        out_specs=out_specs,
        scratch_shapes=[pltpu.VMEM((n_pad, hidden), jnp.float32)],
        compiler_params=pltpu.CompilerParams(
            dimension_semantics=("arbitrary",),
            vmem_limit_bytes=vmem_limit),
        cost_estimate=pl.CostEstimate(flops=int(flops),
                                      transcendentals=int(transcendentals),
                                      bytes_accessed=int(bytes_accessed)),
    )(row_ids, col_ids, p_src, p_dst, h_p, b1, w2, b2, w3h, w3a, b3, w4, b4)

    return h_out_p[:n_nodes], mij_p[:n_edges]


def _init_linear(key, fan_in, fan_out):
    # deterministic init mimicking torch.nn.Linear (uniform +/- 1/sqrt(fan_in))
    kw, kb = jax.random.split(key)
    bound = 1.0 / math.sqrt(fan_in)
    w = jax.random.uniform(kw, (fan_in, fan_out), jnp.float32, -bound, bound)
    b = jax.random.uniform(kb, (1, fan_out), jnp.float32, -bound, bound)
    return w, b


def make_params(key, input_nf, output_nf, hidden_dim):
    ks = jax.random.split(key, 4)
    w1, b1 = _init_linear(ks[0], 2 * input_nf, hidden_dim)            # edge_mlp[0]
    w2, b2 = _init_linear(ks[1], hidden_dim, hidden_dim)              # edge_mlp[2]
    w3, b3 = _init_linear(ks[2], input_nf + hidden_dim, hidden_dim)   # node_mlp[0]
    w4, b4 = _init_linear(ks[3], hidden_dim, output_nf)               # node_mlp[2]
    return dict(w1=w1, b1=b1, w2=w2, b2=b2, w3=w3, b3=b3, w4=w4, b4=b4)


def gcl_reference(h, row, col, params, *, normalization_factor):
    """Pure-JAX f32 reference mirroring the PyTorch module exactly."""
    edge_in = jnp.concatenate([h[row], h[col]], axis=1)
    t = _silu_ref(edge_in @ params["w1"] + params["b1"])
    mij = _silu_ref(t @ params["w2"] + params["b2"])
    agg = jnp.zeros((h.shape[0], mij.shape[1]), jnp.float32).at[row].add(mij)
    agg = agg / normalization_factor
    cat = jnp.concatenate([h, agg], axis=1)
    msg = _silu_ref(cat @ params["w3"] + params["b3"]) @ params["w4"] + params["b4"]
    return h + msg, mij


if __name__ == "__main__":
    input_nf = output_nf = 32
    hidden_dim = 32
    n_nodes = 8
    normalization_factor = 8.0

    key = jax.random.PRNGKey(0)
    k_h, k_p = jax.random.split(key)

    # fully-connected edge index without self loops: E = N*(N-1) = 56
    ii, jj = jnp.meshgrid(jnp.arange(n_nodes), jnp.arange(n_nodes), indexing="ij")
    mask = ii != jj
    row = ii[mask].astype(jnp.int32)
    col = jj[mask].astype(jnp.int32)

    h = jax.random.normal(k_h, (n_nodes, input_nf), jnp.float32)
    params = make_params(k_p, input_nf, output_nf, hidden_dim)

    h_ref, mij_ref = gcl_reference(h, row, col, params,
                                   normalization_factor=normalization_factor)

    # f32 compute path: checks the tiling / in-kernel gather / segment-sum logic.
    h32, m32 = gcl_forward(h, row, col, params,
                           normalization_factor=normalization_factor,
                           compute_dtype=jnp.float32)
    jax.block_until_ready((h32, m32))
    assert jnp.allclose(h32, h_ref, atol=1e-3, rtol=1e-3)
    assert jnp.allclose(m32, mij_ref, atol=1e-3, rtol=1e-3)

    # bf16 MXU-operand / bf16-stream path (default), f32 accumulation.
    hbf, mbf = gcl_forward(h, row, col, params,
                           normalization_factor=normalization_factor,
                           compute_dtype=jnp.bfloat16)
    jax.block_until_ready((hbf, mbf))
    assert jnp.allclose(hbf, h_ref, atol=5e-2, rtol=5e-2)
    assert jnp.allclose(mbf.astype(jnp.float32), mij_ref, atol=5e-2, rtol=5e-2)

    print("KERNEL_OK")
</pallas_src>

<mosaic_0001>
module attributes {stable_mosaic.version = 11 : i64} {
  func.func @gcl_kernel(%arg0: i32, %arg1: memref<1x128xi32, #tpu.memory_space<vmem>>, %arg2: memref<1x128xi32, #tpu.memory_space<vmem>>, %arg3: memref<8x32xf32, #tpu.memory_space<vmem>>, %arg4: memref<8x32xf32, #tpu.memory_space<vmem>>, %arg5: memref<8x32xf32, #tpu.memory_space<vmem>>, %arg6: memref<1x32xf32, #tpu.memory_space<vmem>>, %arg7: memref<32x32xf32, #tpu.memory_space<vmem>>, %arg8: memref<1x32xf32, #tpu.memory_space<vmem>>, %arg9: memref<32x32xf32, #tpu.memory_space<vmem>>, %arg10: memref<32x32xf32, #tpu.memory_space<vmem>>, %arg11: memref<1x32xf32, #tpu.memory_space<vmem>>, %arg12: memref<32x32xf32, #tpu.memory_space<vmem>>, %arg13: memref<1x32xf32, #tpu.memory_space<vmem>>, %arg14: memref<8x32xf32, #tpu.memory_space<vmem>>, %arg15: memref<128x32xf32, #tpu.memory_space<vmem>>, %arg16: memref<8x32xf32, #tpu.memory_space<vmem>>) attributes {dimension_semantics = [#tpu.dimension_semantics<arbitrary>], iteration_bounds = array<i64: 1>, scalar_prefetch = 0 : i64, scratch_operands = 1 : i64, tpu.core_type = #tpu.core_type<tc>, window_params = [{transform_indices = @transform_0, window_bounds = array<i64: 1, 128>}, {transform_indices = @transform_1, window_bounds = array<i64: 1, 128>}, {pipeline_mode = #tpu.pipeline_mode<synchronous>, transform_indices = @transform_2, window_bounds = array<i64: 8, 32>}, {pipeline_mode = #tpu.pipeline_mode<synchronous>, transform_indices = @transform_3, window_bounds = array<i64: 8, 32>}, {pipeline_mode = #tpu.pipeline_mode<synchronous>, transform_indices = @transform_4, window_bounds = array<i64: 8, 32>}, {pipeline_mode = #tpu.pipeline_mode<synchronous>, transform_indices = @transform_5, window_bounds = array<i64: 1, 32>}, {pipeline_mode = #tpu.pipeline_mode<synchronous>, transform_indices = @transform_6, window_bounds = array<i64: 32, 32>}, {pipeline_mode = #tpu.pipeline_mode<synchronous>, transform_indices = @transform_7, window_bounds = array<i64: 1, 32>}, {pipeline_mode = #tpu.pipeline_mode<synchronous>, transform_indices = @transform_8, window_bounds = array<i64: 32, 32>}, {pipeline_mode = #tpu.pipeline_mode<synchronous>, transform_indices = @transform_9, window_bounds = array<i64: 32, 32>}, {pipeline_mode = #tpu.pipeline_mode<synchronous>, transform_indices = @transform_10, window_bounds = array<i64: 1, 32>}, {pipeline_mode = #tpu.pipeline_mode<synchronous>, transform_indices = @transform_11, window_bounds = array<i64: 32, 32>}, {pipeline_mode = #tpu.pipeline_mode<synchronous>, transform_indices = @transform_12, window_bounds = array<i64: 1, 32>}, {pipeline_mode = #tpu.pipeline_mode<synchronous>, transform_indices = @transform_13, window_bounds = array<i64: 8, 32>}, {transform_indices = @transform_14, window_bounds = array<i64: 128, 32>}]} {
    %c0 = arith.constant 0 : index
    %c0_0 = arith.constant 0 : index
    %0 = vector.load %arg1[%c0, %c0_0] : memref<1x128xi32, #tpu.memory_space<vmem>>, vector<1x128xi32>
    %c0_1 = arith.constant 0 : index
    %c0_2 = arith.constant 0 : index
    %1 = vector.load %arg2[%c0_1, %c0_2] : memref<1x128xi32, #tpu.memory_space<vmem>>, vector<1x128xi32>
    %2 = tpu.iota {dimensions = array<i32: 0>} : vector<8x128xi32>
    %3 = vector.broadcast %0 : vector<1x128xi32> to vector<8x128xi32>
    %4 = arith.cmpi eq, %2, %3 : vector<8x128xi32>
    %5 = arith.extui %4 : vector<8x128xi1> to vector<8x128xi32>
    %6 = arith.sitofp %5 : vector<8x128xi32> to vector<8x128xf32>
    %7 = vector.broadcast %1 : vector<1x128xi32> to vector<8x128xi32>
    %8 = arith.cmpi eq, %2, %7 : vector<8x128xi32>
    %9 = arith.extui %8 : vector<8x128xi1> to vector<8x128xi32>
    %10 = arith.sitofp %9 : vector<8x128xi32> to vector<8x128xf32>
    %c0_3 = arith.constant 0 : index
    %c0_4 = arith.constant 0 : index
    %11 = vector.load %arg3[%c0_3, %c0_4] : memref<8x32xf32, #tpu.memory_space<vmem>>, vector<8x32xf32>
    %cst = arith.constant dense<0.000000e+00> : vector<128x32xf32>
    %12 = tpu.matmul %6, %11, %cst {dimension_numbers = #tpu.dot_dimension_numbers<[0], [0], [1], [1], [0, 1, 1, 1], [], []>} : vector<8x128xf32>, vector<8x32xf32>, vector<128x32xf32> -> vector<128x32xf32>
    %c0_5 = arith.constant 0 : index
    %c0_6 = arith.constant 0 : index
    %13 = vector.load %arg4[%c0_5, %c0_6] : memref<8x32xf32, #tpu.memory_space<vmem>>, vector<8x32xf32>
    %cst_7 = arith.constant dense<0.000000e+00> : vector<128x32xf32>
    %14 = tpu.matmul %10, %13, %cst_7 {dimension_numbers = #tpu.dot_dimension_numbers<[0], [0], [1], [1], [0, 1, 1, 1], [], []>} : vector<8x128xf32>, vector<8x32xf32>, vector<128x32xf32> -> vector<128x32xf32>
    %15 = arith.addf %12, %14 : vector<128x32xf32>
    %c0_8 = arith.constant 0 : index
    %c0_9 = arith.constant 0 : index
    %16 = vector.load %arg6[%c0_8, %c0_9] : memref<1x32xf32, #tpu.memory_space<vmem>>, vector<1x32xf32>
    %17 = vector.broadcast %16 : vector<1x32xf32> to vector<128x32xf32>
    %18 = arith.addf %15, %17 : vector<128x32xf32>
    %cst_10 = arith.constant 0.000000e+00 : f32
    %19 = vector.broadcast %cst_10 : f32 to vector<128x32xf32>
    %20 = arith.subf %19, %18 : vector<128x32xf32>
    %21 = math.exp %20 : vector<128x32xf32>
    %cst_11 = arith.constant 1.000000e+00 : f32
    %22 = vector.broadcast %cst_11 : f32 to vector<128x32xf32>
    %23 = arith.addf %22, %21 : vector<128x32xf32>
    %24 = tpu.reciprocal %23 : vector<128x32xf32> -> vector<128x32xf32>
    %25 = arith.mulf %18, %24 : vector<128x32xf32>
    %c0_12 = arith.constant 0 : index
    %c0_13 = arith.constant 0 : index
    %26 = vector.load %arg7[%c0_12, %c0_13] : memref<32x32xf32, #tpu.memory_space<vmem>>, vector<32x32xf32>
    %cst_14 = arith.constant dense<0.000000e+00> : vector<128x32xf32>
    %27 = tpu.matmul %25, %26, %cst_14 {dimension_numbers = #tpu.dot_dimension_numbers<[1], [0], [0], [1], [0, 0, 1, 1], [], []>} : vector<128x32xf32>, vector<32x32xf32>, vector<128x32xf32> -> vector<128x32xf32>
    %c0_15 = arith.constant 0 : index
    %c0_16 = arith.constant 0 : index
    %28 = vector.load %arg8[%c0_15, %c0_16] : memref<1x32xf32, #tpu.memory_space<vmem>>, vector<1x32xf32>
    %29 = vector.broadcast %28 : vector<1x32xf32> to vector<128x32xf32>
    %30 = arith.addf %27, %29 : vector<128x32xf32>
    %cst_17 = arith.constant 0.000000e+00 : f32
    %31 = vector.broadcast %cst_17 : f32 to vector<128x32xf32>
    %32 = arith.subf %31, %30 : vector<128x32xf32>
    %33 = math.exp %32 : vector<128x32xf32>
    %cst_18 = arith.constant 1.000000e+00 : f32
    %34 = vector.broadcast %cst_18 : f32 to vector<128x32xf32>
    %35 = arith.addf %34, %33 : vector<128x32xf32>
    %36 = tpu.reciprocal %35 : vector<128x32xf32> -> vector<128x32xf32>
    %37 = arith.mulf %30, %36 : vector<128x32xf32>
    %c0_19 = arith.constant 0 : index
    %c0_20 = arith.constant 0 : index
    %38 = vector.load %arg15[%c0_19, %c0_20] : memref<128x32xf32, #tpu.memory_space<vmem>>, vector<128x32xf32>
    tpu.vector_store %arg15[%c0_19, %c0_20], %37 {strides = array<i32>} : memref<128x32xf32, #tpu.memory_space<vmem>>, vector<128x32xf32>,
    %cst_21 = arith.constant dense<0.000000e+00> : vector<8x32xf32>
    %39 = tpu.matmul %6, %37, %cst_21 {dimension_numbers = #tpu.dot_dimension_numbers<[1], [0], [0], [1], [0, 0, 1, 1], [], []>} : vector<8x128xf32>, vector<128x32xf32>, vector<8x32xf32> -> vector<8x32xf32>
    %c0_i32 = arith.constant 0 : i32
    %40 = arith.cmpi eq, %arg0, %c0_i32 : i32
    %41 = arith.extui %40 : i1 to i32
    %c0_i32_22 = arith.constant 0 : i32
    %42 = arith.cmpi ne, %41, %c0_i32_22 : i32
    scf.if %42 {
      %c0_27 = arith.constant 0 : index
      %c0_28 = arith.constant 0 : index
      %49 = vector.load %arg16[%c0_27, %c0_28] : memref<8x32xf32, #tpu.memory_space<vmem>>, vector<8x32xf32>
      tpu.vector_store %arg16[%c0_27, %c0_28], %39 {strides = array<i32>} : memref<8x32xf32, #tpu.memory_space<vmem>>, vector<8x32xf32>,
    } else {
    }
    %c0_i32_23 = arith.constant 0 : i32
    %43 = arith.cmpi ne, %arg0, %c0_i32_23 : i32
    %44 = arith.extui %43 : i1 to i32
    %c0_i32_24 = arith.constant 0 : i32
    %45 = arith.cmpi ne, %44, %c0_i32_24 : i32
    scf.if %45 {
      %c0_27 = arith.constant 0 : index
      %c0_28 = arith.constant 0 : index
      %49 = vector.load %arg16[%c0_27, %c0_28] : memref<8x32xf32, #tpu.memory_space<vmem>>, vector<8x32xf32>
      %50 = arith.addf %49, %39 : vector<8x32xf32>
      %c0_29 = arith.constant 0 : index
      %c0_30 = arith.constant 0 : index
      %51 = vector.load %arg16[%c0_29, %c0_30] : memref<8x32xf32, #tpu.memory_space<vmem>>, vector<8x32xf32>
      tpu.vector_store %arg16[%c0_29, %c0_30], %50 {strides = array<i32>} : memref<8x32xf32, #tpu.memory_space<vmem>>, vector<8x32xf32>,
    } else {
    }
    %c0_i32_25 = arith.constant 0 : i32
    %46 = arith.cmpi eq, %arg0, %c0_i32_25 : i32
    %47 = arith.extui %46 : i1 to i32
    %c0_i32_26 = arith.constant 0 : i32
    %48 = arith.cmpi ne, %47, %c0_i32_26 : i32
    scf.if %48 {
      %c0_27 = arith.constant 0 : index
      %c0_28 = arith.constant 0 : index
      %49 = vector.load %arg16[%c0_27, %c0_28] : memref<8x32xf32, #tpu.memory_space<vmem>>, vector<8x32xf32>
      %c0_29 = arith.constant 0 : index
      %c0_30 = arith.constant 0 : index
      %50 = vector.load %arg5[%c0_29, %c0_30] : memref<8x32xf32, #tpu.memory_space<vmem>>, vector<8x32xf32>
      %c0_31 = arith.constant 0 : index
      %c0_32 = arith.constant 0 : index
      %51 = vector.load %arg9[%c0_31, %c0_32] : memref<32x32xf32, #tpu.memory_space<vmem>>, vector<32x32xf32>
      %cst_33 = arith.constant dense<0.000000e+00> : vector<8x32xf32>
      %52 = tpu.matmul %50, %51, %cst_33 {dimension_numbers = #tpu.dot_dimension_numbers<[1], [0], [0], [1], [0, 0, 1, 1], [], []>} : vector<8x32xf32>, vector<32x32xf32>, vector<8x32xf32> -> vector<8x32xf32>
      %c0_34 = arith.constant 0 : index
      %c0_35 = arith.constant 0 : index
      %53 = vector.load %arg10[%c0_34, %c0_35] : memref<32x32xf32, #tpu.memory_space<vmem>>, vector<32x32xf32>
      %cst_36 = arith.constant dense<0.000000e+00> : vector<8x32xf32>
      %54 = tpu.matmul %49, %53, %cst_36 {dimension_numbers = #tpu.dot_dimension_numbers<[1], [0], [0], [1], [0, 0, 1, 1], [], []>} : vector<8x32xf32>, vector<32x32xf32>, vector<8x32xf32> -> vector<8x32xf32>
      %55 = arith.addf %52, %54 : vector<8x32xf32>
      %c0_37 = arith.constant 0 : index
      %c0_38 = arith.constant 0 : index
      %56 = vector.load %arg11[%c0_37, %c0_38] : memref<1x32xf32, #tpu.memory_space<vmem>>, vector<1x32xf32>
      %57 = vector.broadcast %56 : vector<1x32xf32> to vector<8x32xf32>
      %58 = arith.addf %55, %57 : vector<8x32xf32>
      %cst_39 = arith.constant 0.000000e+00 : f32
      %59 = vector.broadcast %cst_39 : f32 to vector<8x32xf32>
      %60 = arith.subf %59, %58 : vector<8x32xf32>
      %61 = math.exp %60 : vector<8x32xf32>
      %cst_40 = arith.constant 1.000000e+00 : f32
      %62 = vector.broadcast %cst_40 : f32 to vector<8x32xf32>
      %63 = arith.addf %62, %61 : vector<8x32xf32>
      %64 = tpu.reciprocal %63 : vector<8x32xf32> -> vector<8x32xf32>
      %65 = arith.mulf %58, %64 : vector<8x32xf32>
      %c0_41 = arith.constant 0 : index
      %c0_42 = arith.constant 0 : index
      %66 = vector.load %arg12[%c0_41, %c0_42] : memref<32x32xf32, #tpu.memory_space<vmem>>, vector<32x32xf32>
      %cst_43 = arith.constant dense<0.000000e+00> : vector<8x32xf32>
      %67 = tpu.matmul %65, %66, %cst_43 {dimension_numbers = #tpu.dot_dimension_numbers<[1], [0], [0], [1], [0, 0, 1, 1], [], []>} : vector<8x32xf32>, vector<32x32xf32>, vector<8x32xf32> -> vector<8x32xf32>
      %c0_44 = arith.constant 0 : index
      %c0_45 = arith.constant 0 : index
      %68 = vector.load %arg13[%c0_44, %c0_45] : memref<1x32xf32, #tpu.memory_space<vmem>>, vector<1x32xf32>
      %69 = vector.broadcast %68 : vector<1x32xf32> to vector<8x32xf32>
      %70 = arith.addf %67, %69 : vector<8x32xf32>
      %71 = arith.addf %50, %70 : vector<8x32xf32>
      %c0_46 = arith.constant 0 : index
      %c0_47 = arith.constant 0 : index
      %72 = vector.load %arg14[%c0_46, %c0_47] : memref<8x32xf32, #tpu.memory_space<vmem>>, vector<8x32xf32>
      tpu.vector_store %arg14[%c0_46, %c0_47], %71 {strides = array<i32>} : memref<8x32xf32, #tpu.memory_space<vmem>>, vector<8x32xf32>,
    } else {
    }
    return
  }
  func.func @transform_0(%arg0: i32) -> (i32, i32) {
    %c0_i32 = arith.constant 0 : i32
    %c0_i32_0 = arith.constant 0 : i32
    return %c0_i32, %arg0 : i32, i32
  }
  func.func @transform_1(%arg0: i32) -> (i32, i32) {
    %c0_i32 = arith.constant 0 : i32
    %c0_i32_0 = arith.constant 0 : i32
    return %c0_i32, %arg0 : i32, i32
  }
  func.func @transform_2(%arg0: i32) -> (i32, i32) {
    %c0_i32 = arith.constant 0 : i32
    %c0_i32_0 = arith.constant 0 : i32
    %c0_i32_1 = arith.constant 0 : i32
    return %c0_i32, %c0_i32_0 : i32, i32
  }
  func.func @transform_3(%arg0: i32) -> (i32, i32) {
    %c0_i32 = arith.constant 0 : i32
    %c0_i32_0 = arith.constant 0 : i32
    %c0_i32_1 = arith.constant 0 : i32
    return %c0_i32, %c0_i32_0 : i32, i32
  }
  func.func @transform_4(%arg0: i32) -> (i32, i32) {
    %c0_i32 = arith.constant 0 : i32
    %c0_i32_0 = arith.constant 0 : i32
    %c0_i32_1 = arith.constant 0 : i32
    return %c0_i32, %c0_i32_0 : i32, i32
  }
  func.func @transform_5(%arg0: i32) -> (i32, i32) {
    %c0_i32 = arith.constant 0 : i32
    %c0_i32_0 = arith.constant 0 : i32
    %c0_i32_1 = arith.constant 0 : i32
    return %c0_i32, %c0_i32_0 : i32, i32
  }
  func.func @transform_6(%arg0: i32) -> (i32, i32) {
    %c0_i32 = arith.constant 0 : i32
    %c0_i32_0 = arith.constant 0 : i32
    %c0_i32_1 = arith.constant 0 : i32
    return %c0_i32, %c0_i32_0 : i32, i32
  }
  func.func @transform_7(%arg0: i32) -> (i32, i32) {
    %c0_i32 = arith.constant 0 : i32
    %c0_i32_0 = arith.constant 0 : i32
    %c0_i32_1 = arith.constant 0 : i32
    return %c0_i32, %c0_i32_0 : i32, i32
  }
  func.func @transform_8(%arg0: i32) -> (i32, i32) {
    %c0_i32 = arith.constant 0 : i32
    %c0_i32_0 = arith.constant 0 : i32
    %c0_i32_1 = arith.constant 0 : i32
    return %c0_i32, %c0_i32_0 : i32, i32
  }
  func.func @transform_9(%arg0: i32) -> (i32, i32) {
    %c0_i32 = arith.constant 0 : i32
    %c0_i32_0 = arith.constant 0 : i32
    %c0_i32_1 = arith.constant 0 : i32
    return %c0_i32, %c0_i32_0 : i32, i32
  }
  func.func @transform_10(%arg0: i32) -> (i32, i32) {
    %c0_i32 = arith.constant 0 : i32
    %c0_i32_0 = arith.constant 0 : i32
    %c0_i32_1 = arith.constant 0 : i32
    return %c0_i32, %c0_i32_0 : i32, i32
  }
  func.func @transform_11(%arg0: i32) -> (i32, i32) {
    %c0_i32 = arith.constant 0 : i32
    %c0_i32_0 = arith.constant 0 : i32
    %c0_i32_1 = arith.constant 0 : i32
    return %c0_i32, %c0_i32_0 : i32, i32
  }
  func.func @transform_12(%arg0: i32) -> (i32, i32) {
    %c0_i32 = arith.constant 0 : i32
    %c0_i32_0 = arith.constant 0 : i32
    %c0_i32_1 = arith.constant 0 : i32
    return %c0_i32, %c0_i32_0 : i32, i32
  }
  func.func @transform_13(%arg0: i32) -> (i32, i32) {
    %c0_i32 = arith.constant 0 : i32
    %c0_i32_0 = arith.constant 0 : i32
    %c0_i32_1 = arith.constant 0 : i32
    return %c0_i32, %c0_i32_0 : i32, i32
  }
  func.func @transform_14(%arg0: i32) -> (i32, i32) {
    %c0_i32 = arith.constant 0 : i32
    %c0_i32_0 = arith.constant 0 : i32
    return %arg0, %c0_i32 : i32, i32
  }
}

</mosaic_0001>

<llo_original>
// kernel: tpu_custom_call.1
$region0: #{tpu_custom_call.1}
  #allocation0 [shape = 'u32[]', space=smem, size = 0x4, offset = 0x4, fixed_abs, tag = 'smem constant byte address 0x4 - core index']
  #allocation1 [shape = 'u32[144,128]{1,0:T(1,128)}', space=vmem, size = 0x12000, scoped, tag = 'internal scratch']
  #allocation2 [shape = 'f32[8,32]{1,0:T(8,128)}', space=vmem, size = 0x1000, scoped, tag = 'scratch operand']
  %s0 = inlined_call_operand.hbm [shape: s32[1,128], index: 0, kind: input, shape index: {}]
  %s1 = inlined_call_operand.vmem [shape: s32[1,128], index: 1, kind: input, shape index: {}]
  %s2 = inlined_call_operand.hbm [shape: f32[8,32], index: 2, kind: input, shape index: {}]
  %s3 = inlined_call_operand.hbm [shape: f32[8,32], index: 3, kind: input, shape index: {}]
  %s4 = inlined_call_operand.hbm [shape: f32[8,32], index: 4, kind: input, shape index: {}]
  %s5 = inlined_call_operand.vmem [shape: f32[1,32], index: 5, kind: input, shape index: {}]
  %s6 = inlined_call_operand.hbm [shape: f32[32,32], index: 6, kind: input, shape index: {}]
  %s7 = inlined_call_operand.hbm [shape: f32[1,32], index: 7, kind: input, shape index: {}]
  %s8 = inlined_call_operand.hbm [shape: f32[32,32], index: 8, kind: input, shape index: {}]
  %s9 = inlined_call_operand.vmem [shape: f32[32,32], index: 9, kind: input, shape index: {}]
  %s10 = inlined_call_operand.vmem [shape: f32[1,32], index: 10, kind: input, shape index: {}]
  %s11 = inlined_call_operand.hbm [shape: f32[32,32], index: 11, kind: input, shape index: {}]
  %s12 = inlined_call_operand.vmem [shape: f32[1,32], index: 12, kind: input, shape index: {}]
  %s13 = inlined_call_operand.hbm [shape: f32[8,32], index: 13, kind: output, shape index: {0}]
  %s14 = inlined_call_operand.vmem [shape: f32[128,32], index: 14, kind: output, shape index: {1}]
  %15 = xla_tuple %s13, %s14
  %s16 = sld [smem:[#allocation0]]
  $region114: #{tpu_custom_call.1} parent=0
    _
  %s18 = ssub.s32 1, %s16
  %s19 = scalar_select 0, %s18, %s16
  $region1: #{tpu_custom_call.1} parent=0
    #allocation3 [shape = 'u8[512]{0}', space=vmem, size = 0x400, scoped, tag = 'input window, operand 0, single buffered']
    #allocation4 [shape = 's32[1]{0}', space=sflag, size = 0x4, scoped, tag = 'scoped memory for tpu_custom_call.1']
    #allocation5 [shape = 's32[1]{0}', space=sflag, size = 0x4, scoped, tag = 'scoped memory for tpu_custom_call.1']
    #allocation6 [shape = 'u8[4096]{0}', space=vmem, size = 0x1000, scoped, tag = 'input window, operand 2, single buffered']
    #allocation7 [shape = 's32[1]{0}', space=sflag, size = 0x4, scoped, tag = 'scoped memory for tpu_custom_call.1']
    #allocation8 [shape = 'u8[4096]{0}', space=vmem, size = 0x1000, scoped, tag = 'input window, operand 3, single buffered']
    #allocation9 [shape = 'u8[4096]{0}', space=vmem, size = 0x1000, scoped, tag = 'input window, operand 4, single buffered']
    #allocation10 [shape = 's32[1]{0}', space=sflag, size = 0x4, scoped, tag = 'scoped memory for tpu_custom_call.1']
    #allocation11 [shape = 'u8[16384]{0}', space=vmem, size = 0x4000, scoped, tag = 'input window, operand 6, single buffered']
    #allocation12 [shape = 'u8[512]{0}', space=vmem, size = 0x400, scoped, tag = 'input window, operand 7, single buffered']
    #allocation13 [shape = 's32[1]{0}', space=sflag, size = 0x4, scoped, tag = 'scoped memory for tpu_custom_call.1']
    #allocation14 [shape = 'u8[16384]{0}', space=vmem, size = 0x4000, scoped, tag = 'input window, operand 8, single buffered']
    #allocation15 [shape = 'u8[16384]{0}', space=vmem, size = 0x4000, scoped, tag = 'input window, operand 11, single buffered']
    #allocation16 [shape = 's32[1]{0}', space=sflag, size = 0x4, scoped, tag = 'scoped memory for tpu_custom_call.1']
    #allocation17 [shape = 'u8[4096]{0}', space=vmem, size = 0x1000, scoped, tag = 'output window, operand 0, single buffered']
    %20 = vsyncpa [#allocation4], 0
    %21 = vsyncpa [#allocation7], 0
    %22 = vsyncpa [#allocation10], 0
    %23 = vsyncpa [#allocation13], 0
    %24 = vsyncpa [#allocation16], 0
    %25 = vsyncpa [#allocation5], 0
    // Predicated region
    $region2: #{tpu_custom_call.1} parent=1 // pred_check
      _
    $region3: #{tpu_custom_call.1} parent=1 // pred_check_branch
      %27 = sbr.rel (0) target = $region5
    $region4: #{tpu_custom_call.1} parent=1 // pred_region
      %s29 = ssub.s32 16, 16
      %30 = vsyncadd [#allocation4], %s29
      %s32 = sshll.u32 [#allocation3], 4
      %s33 = int_to_ptr.vmem [resolvable:$true] %s32
      %35 = dma.hbm_to_vmem [thread:$0]  %s0, 16, %s33, [#allocation4]
    $region5: #{tpu_custom_call.1} parent=1 // pred_fallthru
      _
    // Predicated region
    $region6: #{tpu_custom_call.1} parent=1 // pred_check
      _
    $region7: #{tpu_custom_call.1} parent=1 // pred_check_branch
      %37 = sbr.rel (0) target = $region9
    $region8: #{tpu_custom_call.1} parent=1 // pred_region
      _
    $region9: #{tpu_custom_call.1} parent=1 // pred_fallthru
      _
    // Predicated region
    $region10: #{tpu_custom_call.1} parent=1 // pred_check
      _
    $region11: #{tpu_custom_call.1} parent=1 // pred_check_branch
      %39 = sbr.rel (0) target = $region13
    $region12: #{tpu_custom_call.1} parent=1 // pred_region
      %s41 = ssub.s32 128, 128
      %42 = vsyncadd [#allocation7], %s41
      %s44 = sshll.u32 [#allocation6], 4
      %s45 = int_to_ptr.vmem [resolvable:$true] %s44
      %47 = dma.hbm_to_vmem [thread:$0]  %s2, 128, %s45, [#allocation7]
    $region13: #{tpu_custom_call.1} parent=1 // pred_fallthru
      _
    // Predicated region
    $region14: #{tpu_custom_call.1} parent=1 // pred_check
      _
    $region15: #{tpu_custom_call.1} parent=1 // pred_check_branch
      %49 = sbr.rel (0) target = $region17
    $region16: #{tpu_custom_call.1} parent=1 // pred_region
      %s51 = ssub.s32 128, 128
      %52 = vsyncadd [#allocation7], %s51
      %s54 = sshll.u32 [#allocation8], 4
      %s55 = int_to_ptr.vmem [resolvable:$true] %s54
      %57 = dma.hbm_to_vmem [thread:$0]  %s3, 128, %s55, [#allocation7]
    $region17: #{tpu_custom_call.1} parent=1 // pred_fallthru
      _
    // Predicated region
    $region18: #{tpu_custom_call.1} parent=1 // pred_check
      _
    $region19: #{tpu_custom_call.1} parent=1 // pred_check_branch
      %59 = sbr.rel (0) target = $region21
    $region20: #{tpu_custom_call.1} parent=1 // pred_region
      %s61 = ssub.s32 128, 128
      %62 = vsyncadd [#allocation10], %s61
      %s64 = sshll.u32 [#allocation9], 4
      %s65 = int_to_ptr.vmem [resolvable:$true] %s64
      %67 = dma.hbm_to_vmem [thread:$0]  %s4, 128, %s65, [#allocation10]
    $region21: #{tpu_custom_call.1} parent=1 // pred_fallthru
      _
    // Predicated region
    $region22: #{tpu_custom_call.1} parent=1 // pred_check
      _
    $region23: #{tpu_custom_call.1} parent=1 // pred_check_branch
      %69 = sbr.rel (0) target = $region25
    $region24: #{tpu_custom_call.1} parent=1 // pred_region
      _
    $region25: #{tpu_custom_call.1} parent=1 // pred_fallthru
      _
    // Predicated region
    $region26: #{tpu_custom_call.1} parent=1 // pred_check
      _
    $region27: #{tpu_custom_call.1} parent=1 // pred_check_branch
      %71 = sbr.rel (0) target = $region29
    $region28: #{tpu_custom_call.1} parent=1 // pred_region
      %s73 = ssub.s32 512, 512
      %74 = vsyncadd [#allocation10], %s73
      %s75 = sshll.u32 [#allocation11], 4
      %s76 = int_to_ptr.vmem [resolvable:$true] %s75
      %81 = dma.hbm_to_vmem [thread:$0]  %s6, 512, %s76, [#allocation10], 128, 128, 8
    $region29: #{tpu_custom_call.1} parent=1 // pred_fallthru
      _
    // Predicated region
    $region30: #{tpu_custom_call.1} parent=1 // pred_check
      _
    $region31: #{tpu_custom_call.1} parent=1 // pred_check_branch
      %83 = sbr.rel (0) target = $region33
    $region32: #{tpu_custom_call.1} parent=1 // pred_region
      %s85 = ssub.s32 16, 16
      %86 = vsyncadd [#allocation13], %s85
      %s88 = sshll.u32 [#allocation12], 4
      %s89 = int_to_ptr.vmem [resolvable:$true] %s88
      %91 = dma.hbm_to_vmem [thread:$0]  %s7, 16, %s89, [#allocation13]
    $region33: #{tpu_custom_call.1} parent=1 // pred_fallthru
      _
    // Predicated region
    $region34: #{tpu_custom_call.1} parent=1 // pred_check
      _
    $region35: #{tpu_custom_call.1} parent=1 // pred_check_branch
      %93 = sbr.rel (0) target = $region37
    $region36: #{tpu_custom_call.1} parent=1 // pred_region
      %s95 = ssub.s32 512, 512
      %96 = vsyncadd [#allocation13], %s95
      %s97 = sshll.u32 [#allocation14], 4
      %s98 = int_to_ptr.vmem [resolvable:$true] %s97
      %103 = dma.hbm_to_vmem [thread:$0]  %s8, 512, %s98, [#allocation13], 128, 128, 8
    $region37: #{tpu_custom_call.1} parent=1 // pred_fallthru
      _
    // Predicated region
    $region38: #{tpu_custom_call.1} parent=1 // pred_check
      _
    $region39: #{tpu_custom_call.1} parent=1 // pred_check_branch
      %105 = sbr.rel (0) target = $region41
    $region40: #{tpu_custom_call.1} parent=1 // pred_region
      _
    $region41: #{tpu_custom_call.1} parent=1 // pred_fallthru
      _
    // Predicated region
    $region42: #{tpu_custom_call.1} parent=1 // pred_check
      _
    $region43: #{tpu_custom_call.1} parent=1 // pred_check_branch
      %107 = sbr.rel (0) target = $region45
    $region44: #{tpu_custom_call.1} parent=1 // pred_region
      _
    $region45: #{tpu_custom_call.1} parent=1 // pred_fallthru
      _
    // Predicated region
    $region46: #{tpu_custom_call.1} parent=1 // pred_check
      _
    $region47: #{tpu_custom_call.1} parent=1 // pred_check_branch
      %109 = sbr.rel (0) target = $region49
    $region48: #{tpu_custom_call.1} parent=1 // pred_region
      %s111 = ssub.s32 512, 512
      %112 = vsyncadd [#allocation16], %s111
      %s113 = sshll.u32 [#allocation15], 4
      %s114 = int_to_ptr.vmem [resolvable:$true] %s113
      %119 = dma.hbm_to_vmem [thread:$0]  %s11, 512, %s114, [#allocation16], 128, 128, 8
    $region49: #{tpu_custom_call.1} parent=1 // pred_fallthru
      _
    // Predicated region
    $region50: #{tpu_custom_call.1} parent=1 // pred_check
      _
    $region51: #{tpu_custom_call.1} parent=1 // pred_check_branch
      %121 = sbr.rel (0) target = $region53
    $region52: #{tpu_custom_call.1} parent=1 // pred_region
      _
    $region53: #{tpu_custom_call.1} parent=1 // pred_fallthru
      _
    // Predicated region
    $region54: #{tpu_custom_call.1} parent=1 // pred_check
      _
    $region55: #{tpu_custom_call.1} parent=1 // pred_check_branch
      %123 = sbr.rel (0) target = $region57
    $region56: #{tpu_custom_call.1} parent=1 // pred_region
      %124 = dma.done [#allocation4], 16
    $region57: #{tpu_custom_call.1} parent=1 // pred_fallthru
      _
    // Predicated region
    $region58: #{tpu_custom_call.1} parent=1 // pred_check
      _
    $region59: #{tpu_custom_call.1} parent=1 // pred_check_branch
      %126 = sbr.rel (0) target = $region61
    $region60: #{tpu_custom_call.1} parent=1 // pred_region
      %127 = dma.done [#allocation7], 128
    $region61: #{tpu_custom_call.1} parent=1 // pred_fallthru
      _
    // Predicated region
    $region62: #{tpu_custom_call.1} parent=1 // pred_check
      _
    $region63: #{tpu_custom_call.1} parent=1 // pred_check_branch
      %129 = sbr.rel (0) target = $region65
    $region64: #{tpu_custom_call.1} parent=1 // pred_region
      %130 = dma.done [#allocation7], 128
    $region65: #{tpu_custom_call.1} parent=1 // pred_fallthru
      _
    // Predicated region
    $region66: #{tpu_custom_call.1} parent=1 // pred_check
      _
    $region67: #{tpu_custom_call.1} parent=1 // pred_check_branch
      %132 = sbr.rel (0) target = $region69
    $region68: #{tpu_custom_call.1} parent=1 // pred_region
      %133 = dma.done [#allocation10], 128
    $region69: #{tpu_custom_call.1} parent=1 // pred_fallthru
      _
    // Predicated region
    $region70: #{tpu_custom_call.1} parent=1 // pred_check
      _
    $region71: #{tpu_custom_call.1} parent=1 // pred_check_branch
      %135 = sbr.rel (0) target = $region73
    $region72: #{tpu_custom_call.1} parent=1 // pred_region
      %136 = dma.done [#allocation10], 512
    $region73: #{tpu_custom_call.1} parent=1 // pred_fallthru
      _
    // Predicated region
    $region74: #{tpu_custom_call.1} parent=1 // pred_check
      _
    $region75: #{tpu_custom_call.1} parent=1 // pred_check_branch
      %138 = sbr.rel (0) target = $region77
    $region76: #{tpu_custom_call.1} parent=1 // pred_region
      %139 = dma.done [#allocation13], 16
    $region77: #{tpu_custom_call.1} parent=1 // pred_fallthru
      _
    // Predicated region
    $region78: #{tpu_custom_call.1} parent=1 // pred_check
      _
    $region79: #{tpu_custom_call.1} parent=1 // pred_check_branch
      %141 = sbr.rel (0) target = $region81
    $region80: #{tpu_custom_call.1} parent=1 // pred_region
      %142 = dma.done [#allocation13], 512
    $region81: #{tpu_custom_call.1} parent=1 // pred_fallthru
      _
    // Predicated region
    $region82: #{tpu_custom_call.1} parent=1 // pred_check
      _
    $region83: #{tpu_custom_call.1} parent=1 // pred_check_branch
      %144 = sbr.rel (0) target = $region85
    $region84: #{tpu_custom_call.1} parent=1 // pred_region
      %145 = dma.done [#allocation16], 512
    $region85: #{tpu_custom_call.1} parent=1 // pred_fallthru
      _
    %v146 = vld [vmem:[#allocation3] sm:$0x1]
    %v147 = vld [vmem:[%s1] sm:$0x1]
    %v148 = vlaneseq
    %v149 = vshrl.u32 %v148, 7
    %v150 = vlaneseq
    %v151 = vshrl.u32 %v150, 7
    %v152 = vsub.s32 0, %v151
    %v153 = vrot.slane %v146, %v152
    %vm154 = vcmp.eq.s32.totalorder %v149, %v153
    %v155 = vsel %vm154, 1, 0
    %v156 = vcvt.s32.f32 %v155
    %v157 = vlaneseq
    %v158 = vshrl.u32 %v157, 7
    %v159 = vsub.s32 0, %v158
    %v160 = vrot.slane %v147, %v159
    %vm161 = vcmp.eq.s32.totalorder %v149, %v160
    %v162 = vsel %vm161, 1, 0
    %v163 = vcvt.s32.f32 %v162
    %v164 = vld [vmem:[#allocation6] sm:$0xff]
    %v165 = vld [vmem:[#allocation8] sm:$0xff]
    %166 = vxpose.xlu0.b32.start [1/16] %v163, 128
    %167 = vxpose.xlu0.b32.cont [2/16] 0.0, 128
    %168 = vxpose.xlu0.b32.cont [3/16] 0.0, 128
    %169 = vxpose.xlu0.b32.cont [4/16] 0.0, 128
    %170 = vxpose.xlu0.b32.cont [5/16] 0.0, 128
    %171 = vxpose.xlu0.b32.cont [6/16] 0.0, 128
    %172 = vxpose.xlu0.b32.cont [7/16] 0.0, 128
    %173 = vxpose.xlu0.b32.cont [8/16] 0.0, 128
    %174 = vxpose.xlu0.b32.cont [9/16] 0.0, 128
    %175 = vxpose.xlu0.b32.cont [10/16] 0.0, 128
    %176 = vxpose.xlu0.b32.cont [11/16] 0.0, 128
    %177 = vxpose.xlu0.b32.cont [12/16] 0.0, 128
    %178 = vxpose.xlu0.b32.cont [13/16] 0.0, 128
    %179 = vxpose.xlu0.b32.cont [14/16] 0.0, 128
    %180 = vxpose.xlu0.b32.cont [15/16] 0.0, 128
    %181 = vxpose.xlu0.b32.end [16/16] 0.0, 128
    %v182 = vpop.trf.xlu0
    %v183 = vpop.trf.xlu0
    %v184 = vpop.trf.xlu0
    %v185 = vpop.trf.xlu0
    %v186 = vpop.trf.xlu0
    %v187 = vpop.trf.xlu0
    %v188 = vpop.trf.xlu0
    %v189 = vpop.trf.xlu0
    %v190 = vpop.trf.xlu0
    %v191 = vpop.trf.xlu0
    %v192 = vpop.trf.xlu0
    %v193 = vpop.trf.xlu0
    %v194 = vpop.trf.xlu0
    %v195 = vpop.trf.xlu0
    %v196 = vpop.trf.xlu0
    %v197 = vpop.trf.xlu0
    %vm198 = vcmask 64512
    %v200 = vsel %vm198, %v182, 0
    %v203 = vsel %vm198, %v183, 0
    %v206 = vsel %vm198, %v184, 0
    %v209 = vsel %vm198, %v185, 0
    %v212 = vsel %vm198, %v186, 0
    %v215 = vsel %vm198, %v187, 0
    %v218 = vsel %vm198, %v188, 0
    %v221 = vsel %vm198, %v189, 0
    %v224 = vsel %vm198, %v190, 0
    %v227 = vsel %vm198, %v191, 0
    %v230 = vsel %vm198, %v192, 0
    %v233 = vsel %vm198, %v193, 0
    %v236 = vsel %vm198, %v194, 0
    %v239 = vsel %vm198, %v195, 0
    %v242 = vsel %vm198, %v196, 0
    %v245 = vsel %vm198, %v197, 0
    %247 = vmatprep.subr.mxu0 0.0
    %248 = vmatpush1.msra.mxu0 %v165
    %249 = vmatprep.subr.mxu0 0.0
    %250 = vmatpush1.msra.mxu0 0.0
    %251 = vmatprep.subr.mxu0 0.0
    %252 = vmatpush1.msra.mxu0 0.0
    %253 = vmatprep.subr.mxu0 0.0
    %254 = vmatpush1.msra.mxu0 0.0
    %255 = vmatprep.subr.mxu0 0.0
    %256 = vmatpush1.msra.mxu0 0.0
    %257 = vmatprep.subr.mxu0 0.0
    %258 = vmatpush1.msra.mxu0 0.0
    %259 = vmatprep.subr.mxu0 0.0
    %260 = vmatpush1.msra.mxu0 0.0
    %261 = vmatprep.subr.mxu0 0.0
    %262 = vmatpush1.msra.mxu0 0.0
    %263 = vmatprep.subr.mxu0 0.0
    %264 = vmatpush1.msra.mxu0 0.0
    %265 = vmatprep.subr.mxu0 0.0
    %266 = vmatpush1.msra.mxu0 0.0
    %267 = vmatprep.subr.mxu0 0.0
    %268 = vmatpush1.msra.mxu0 0.0
    %269 = vmatprep.subr.mxu0 0.0
    %270 = vmatpush1.msra.mxu0 0.0
    %271 = vmatprep.subr.mxu0 0.0
    %272 = vmatpush1.msra.mxu0 0.0
    %273 = vmatprep.subr.mxu0 0.0
    %274 = vmatpush1.msra.mxu0 0.0
    %275 = vmatprep.subr.mxu0 0.0
    %276 = vmatpush1.msra.mxu0 0.0
    %277 = vmatprep.subr.mxu0 0.0
    %278 = vmatpush1.msra.mxu0 0.0
    %279 = vmatprep.subr.mxu0 0.0
    %280 = vmatpush1.msra.mxu0 0.0
    %281 = vmatprep.subr.mxu0 0.0
    %282 = vmatpush1.msra.mxu0 0.0
    %283 = vmatprep.subr.mxu0 0.0
    %284 = vmatpush1.msra.mxu0 0.0
    %285 = vmatprep.subr.mxu0 0.0
    %286 = vmatpush1.msra.mxu0 0.0
    %287 = vmatprep.subr.mxu0 0.0
    %288 = vmatpush1.msra.mxu0 0.0
    %289 = vmatprep.subr.mxu0 0.0
    %290 = vmatpush1.msra.mxu0 0.0
    %291 = vmatprep.subr.mxu0 0.0
    %292 = vmatpush1.msra.mxu0 0.0
    %293 = vmatprep.subr.mxu0 0.0
    %294 = vmatpush1.msra.mxu0 0.0
    %295 = vmatprep.subr.mxu0 0.0
    %296 = vmatpush1.msra.mxu0 0.0
    %297 = vmatprep.subr.mxu0 0.0
    %298 = vmatpush1.msra.mxu0 0.0
    %299 = vmatprep.subr.mxu0 0.0
    %300 = vmatpush1.msra.mxu0 0.0
    %301 = vmatprep.subr.mxu0 0.0
    %302 = vmatpush1.msra.mxu0 0.0
    %303 = vmatprep.subr.mxu0 0.0
    %304 = vmatpush1.msra.mxu0 0.0
    %305 = vmatprep.subr.mxu0 0.0
    %306 = vmatpush1.msra.mxu0 0.0
    %307 = vmatprep.subr.mxu0 0.0
    %308 = vmatpush1.msra.mxu0 0.0
    %309 = vmatprep.subr.mxu0 0.0
    %310 = vmatpush1.msra.mxu0 0.0
    %311 = vmatprep.mubr.f32.mxu0 0.0
    %312 = vmatmul.mubr.f32.gmra.mrb[0].mxu0 %v200
    %v313 = vpop.f32.mrb[0].mxu0
    %v314 = vadd.f32 0.0, %v313
    %v315 = vpop.f32.mrb[0].mxu0
    %316 = vmatprep.mubr.f32.mxu0 0.0
    %317 = vmatmul.mubr.f32.gmra.mrb[0].mxu0 %v203
    %v318 = vpop.f32.mrb[0].mxu0
    %v319 = vadd.f32 0.0, %v318
    %v320 = vpop.f32.mrb[0].mxu0
    %321 = vmatprep.mubr.f32.mxu0 0.0
    %322 = vmatmul.mubr.f32.gmra.mrb[0].mxu0 %v206
    %v323 = vpop.f32.mrb[0].mxu0
    %v324 = vadd.f32 0.0, %v323
    %v325 = vpop.f32.mrb[0].mxu0
    %326 = vmatprep.mubr.f32.mxu0 0.0
    %327 = vmatmul.mubr.f32.gmra.mrb[0].mxu0 %v209
    %v328 = vpop.f32.mrb[0].mxu0
    %v329 = vadd.f32 0.0, %v328
    %v330 = vpop.f32.mrb[0].mxu0
    %331 = vmatprep.mubr.f32.mxu0 0.0
    %332 = vmatmul.mubr.f32.gmra.mrb[0].mxu0 %v212
    %v333 = vpop.f32.mrb[0].mxu0
    %v334 = vadd.f32 0.0, %v333
    %v335 = vpop.f32.mrb[0].mxu0
    %336 = vmatprep.mubr.f32.mxu0 0.0
    %337 = vmatmul.mubr.f32.gmra.mrb[0].mxu0 %v215
    %v338 = vpop.f32.mrb[0].mxu0
    %v339 = vadd.f32 0.0, %v338
    %v340 = vpop.f32.mrb[0].mxu0
    %341 = vmatprep.mubr.f32.mxu0 0.0
    %342 = vmatmul.mubr.f32.gmra.mrb[0].mxu0 %v218
    %v343 = vpop.f32.mrb[0].mxu0
    %v344 = vadd.f32 0.0, %v343
    %v345 = vpop.f32.mrb[0].mxu0
    %346 = vmatprep.mubr.f32.mxu0 0.0
    %347 = vmatmul.mubr.f32.gmra.mrb[0].mxu0 %v221
    %v348 = vpop.f32.mrb[0].mxu0
    %v349 = vadd.f32 0.0, %v348
    %v350 = vpop.f32.mrb[0].mxu0
    %351 = vmatprep.mubr.f32.mxu0 0.0
    %352 = vmatmul.mubr.f32.gmra.mrb[0].mxu0 %v224
    %v353 = vpop.f32.mrb[0].mxu0
    %v354 = vadd.f32 0.0, %v353
    %v355 = vpop.f32.mrb[0].mxu0
    %356 = vmatprep.mubr.f32.mxu0 0.0
    %357 = vmatmul.mubr.f32.gmra.mrb[0].mxu0 %v227
    %v358 = vpop.f32.mrb[0].mxu0
    %v359 = vadd.f32 0.0, %v358
    %v360 = vpop.f32.mrb[0].mxu0
    %361 = vmatprep.mubr.f32.mxu0 0.0
    %362 = vmatmul.mubr.f32.gmra.mrb[0].mxu0 %v230
    %v363 = vpop.f32.mrb[0].mxu0
    %v364 = vadd.f32 0.0, %v363
    %v365 = vpop.f32.mrb[0].mxu0
    %366 = vmatprep.mubr.f32.mxu0 0.0
    %367 = vmatmul.mubr.f32.gmra.mrb[0].mxu0 %v233
    %v368 = vpop.f32.mrb[0].mxu0
    %v369 = vadd.f32 0.0, %v368
    %v370 = vpop.f32.mrb[0].mxu0
    %371 = vmatprep.mubr.f32.mxu0 0.0
    %372 = vmatmul.mubr.f32.gmra.mrb[0].mxu0 %v236
    %v373 = vpop.f32.mrb[0].mxu0
    %v374 = vadd.f32 0.0, %v373
    %v375 = vpop.f32.mrb[0].mxu0
    %376 = vmatprep.mubr.f32.mxu0 0.0
    %377 = vmatmul.mubr.f32.gmra.mrb[0].mxu0 %v239
    %v378 = vpop.f32.mrb[0].mxu0
    %v379 = vadd.f32 0.0, %v378
    %v380 = vpop.f32.mrb[0].mxu0
    %381 = vmatprep.mubr.f32.mxu0 0.0
    %382 = vmatmul.mubr.f32.gmra.mrb[0].mxu0 %v242
    %v383 = vpop.f32.mrb[0].mxu0
    %v384 = vadd.f32 0.0, %v383
    %v385 = vpop.f32.mrb[0].mxu0
    %386 = vmatprep.mubr.f32.mxu0 0.0
    %387 = vmatmul.mubr.f32.gmra.mrb[0].mxu0 %v245
    %v388 = vpop.f32.mrb[0].mxu0
    %v389 = vadd.f32 0.0, %v388
    %v390 = vpop.f32.mrb[0].mxu0
    %391 = vdwg.mxu0
    %392 = vxpose.xlu0.b32.start [1/16] %v156, 128
    %393 = vxpose.xlu0.b32.cont [2/16] 0.0, 128
    %394 = vxpose.xlu0.b32.cont [3/16] 0.0, 128
    %395 = vxpose.xlu0.b32.cont [4/16] 0.0, 128
    %396 = vxpose.xlu0.b32.cont [5/16] 0.0, 128
    %397 = vxpose.xlu0.b32.cont [6/16] 0.0, 128
    %398 = vxpose.xlu0.b32.cont [7/16] 0.0, 128
    %399 = vxpose.xlu0.b32.cont [8/16] 0.0, 128
    %400 = vxpose.xlu0.b32.cont [9/16] 0.0, 128
    %401 = vxpose.xlu0.b32.cont [10/16] 0.0, 128
    %402 = vxpose.xlu0.b32.cont [11/16] 0.0, 128
    %403 = vxpose.xlu0.b32.cont [12/16] 0.0, 128
    %404 = vxpose.xlu0.b32.cont [13/16] 0.0, 128
    %405 = vxpose.xlu0.b32.cont [14/16] 0.0, 128
    %406 = vxpose.xlu0.b32.cont [15/16] 0.0, 128
    %407 = vxpose.xlu0.b32.end [16/16] 0.0, 128
    %v408 = vpop.trf.xlu0
    %v409 = vpop.trf.xlu0
    %v410 = vpop.trf.xlu0
    %v411 = vpop.trf.xlu0
    %v412 = vpop.trf.xlu0
    %v413 = vpop.trf.xlu0
    %v414 = vpop.trf.xlu0
    %v415 = vpop.trf.xlu0
    %v416 = vpop.trf.xlu0
    %v417 = vpop.trf.xlu0
    %v418 = vpop.trf.xlu0
    %v419 = vpop.trf.xlu0
    %v420 = vpop.trf.xlu0
    %v421 = vpop.trf.xlu0
    %v422 = vpop.trf.xlu0
    %v423 = vpop.trf.xlu0
    %v425 = vsel %vm198, %v408, 0
    %v428 = vsel %vm198, %v409, 0
    %v431 = vsel %vm198, %v410, 0
    %v434 = vsel %vm198, %v411, 0
    %v437 = vsel %vm198, %v412, 0
    %v440 = vsel %vm198, %v413, 0
    %v443 = vsel %vm198, %v414, 0
    %v446 = vsel %vm198, %v415, 0
    %v449 = vsel %vm198, %v416, 0
    %v452 = vsel %vm198, %v417, 0
    %v455 = vsel %vm198, %v418, 0
    %v458 = vsel %vm198, %v419, 0
    %v461 = vsel %vm198, %v420, 0
    %v464 = vsel %vm198, %v421, 0
    %v467 = vsel %vm198, %v422, 0
    %v470 = vsel %vm198, %v423, 0
    %472 = vmatprep.subr.mxu0 0.0
    %473 = vmatpush1.msra.mxu0 %v164
    %474 = vmatprep.subr.mxu0 0.0
    %475 = vmatpush1.msra.mxu0 0.0
    %476 = vmatprep.subr.mxu0 0.0
    %477 = vmatpush1.msra.mxu0 0.0
    %478 = vmatprep.subr.mxu0 0.0
    %479 = vmatpush1.msra.mxu0 0.0
    %480 = vmatprep.subr.mxu0 0.0
    %481 = vmatpush1.msra.mxu0 0.0
    %482 = vmatprep.subr.mxu0 0.0
    %483 = vmatpush1.msra.mxu0 0.0
    %484 = vmatprep.subr.mxu0 0.0
    %485 = vmatpush1.msra.mxu0 0.0
    %486 = vmatprep.subr.mxu0 0.0
    %487 = vmatpush1.msra.mxu0 0.0
    %488 = vmatprep.subr.mxu0 0.0
    %489 = vmatpush1.msra.mxu0 0.0
    %490 = vmatprep.subr.mxu0 0.0
    %491 = vmatpush1.msra.mxu0 0.0
    %492 = vmatprep.subr.mxu0 0.0
    %493 = vmatpush1.msra.mxu0 0.0
    %494 = vmatprep.subr.mxu0 0.0
    %495 = vmatpush1.msra.mxu0 0.0
    %496 = vmatprep.subr.mxu0 0.0
    %497 = vmatpush1.msra.mxu0 0.0
    %498 = vmatprep.subr.mxu0 0.0
    %499 = vmatpush1.msra.mxu0 0.0
    %500 = vmatprep.subr.mxu0 0.0
    %501 = vmatpush1.msra.mxu0 0.0
    %502 = vmatprep.subr.mxu0 0.0
    %503 = vmatpush1.msra.mxu0 0.0
    %504 = vmatprep.subr.mxu0 0.0
    %505 = vmatpush1.msra.mxu0 0.0
    %506 = vmatprep.subr.mxu0 0.0
    %507 = vmatpush1.msra.mxu0 0.0
    %508 = vmatprep.subr.mxu0 0.0
    %509 = vmatpush1.msra.mxu0 0.0
    %510 = vmatprep.subr.mxu0 0.0
    %511 = vmatpush1.msra.mxu0 0.0
    %512 = vmatprep.subr.mxu0 0.0
    %513 = vmatpush1.msra.mxu0 0.0
    %514 = vmatprep.subr.mxu0 0.0
    %515 = vmatpush1.msra.mxu0 0.0
    %516 = vmatprep.subr.mxu0 0.0
    %517 = vmatpush1.msra.mxu0 0.0
    %518 = vmatprep.subr.mxu0 0.0
    %519 = vmatpush1.msra.mxu0 0.0
    %520 = vmatprep.subr.mxu0 0.0
    %521 = vmatpush1.msra.mxu0 0.0
    %522 = vmatprep.subr.mxu0 0.0
    %523 = vmatpush1.msra.mxu0 0.0
    %524 = vmatprep.subr.mxu0 0.0
    %525 = vmatpush1.msra.mxu0 0.0
    %526 = vmatprep.subr.mxu0 0.0
    %527 = vmatpush1.msra.mxu0 0.0
    %528 = vmatprep.subr.mxu0 0.0
    %529 = vmatpush1.msra.mxu0 0.0
    %530 = vmatprep.subr.mxu0 0.0
    %531 = vmatpush1.msra.mxu0 0.0
    %532 = vmatprep.subr.mxu0 0.0
    %533 = vmatpush1.msra.mxu0 0.0
    %534 = vmatprep.subr.mxu0 0.0
    %535 = vmatpush1.msra.mxu0 0.0
    %536 = vmatprep.mubr.f32.mxu0 0.0
    %537 = vmatmul.mubr.f32.gmra.mrb[0].mxu0 %v425
    %v538 = vpop.f32.mrb[0].mxu0
    %v539 = vadd.f32 %v314, %v538
    %v540 = vpop.f32.mrb[0].mxu0
    %541 = vmatprep.mubr.f32.mxu0 0.0
    %542 = vmatmul.mubr.f32.gmra.mrb[0].mxu0 %v428
    %v543 = vpop.f32.mrb[0].mxu0
    %v544 = vadd.f32 %v319, %v543
    %v545 = vpop.f32.mrb[0].mxu0
    %546 = vmatprep.mubr.f32.mxu0 0.0
    %547 = vmatmul.mubr.f32.gmra.mrb[0].mxu0 %v431
    %v548 = vpop.f32.mrb[0].mxu0
    %v549 = vadd.f32 %v324, %v548
    %v550 = vpop.f32.mrb[0].mxu0
    %551 = vmatprep.mubr.f32.mxu0 0.0
    %552 = vmatmul.mubr.f32.gmra.mrb[0].mxu0 %v434
    %v553 = vpop.f32.mrb[0].mxu0
    %v554 = vadd.f32 %v329, %v553
    %v555 = vpop.f32.mrb[0].mxu0
    %556 = vmatprep.mubr.f32.mxu0 0.0
    %557 = vmatmul.mubr.f32.gmra.mrb[0].mxu0 %v437
    %v558 = vpop.f32.mrb[0].mxu0
    %v559 = vadd.f32 %v334, %v558
    %v560 = vpop.f32.mrb[0].mxu0
    %561 = vmatprep.mubr.f32.mxu0 0.0
    %562 = vmatmul.mubr.f32.gmra.mrb[0].mxu0 %v440
    %v563 = vpop.f32.mrb[0].mxu0
    %v564 = vadd.f32 %v339, %v563
    %v565 = vpop.f32.mrb[0].mxu0
    %566 = vmatprep.mubr.f32.mxu0 0.0
    %567 = vmatmul.mubr.f32.gmra.mrb[0].mxu0 %v443
    %v568 = vpop.f32.mrb[0].mxu0
    %v569 = vadd.f32 %v344, %v568
    %v570 = vpop.f32.mrb[0].mxu0
    %571 = vmatprep.mubr.f32.mxu0 0.0
    %572 = vmatmul.mubr.f32.gmra.mrb[0].mxu0 %v446
    %v573 = vpop.f32.mrb[0].mxu0
    %v574 = vadd.f32 %v349, %v573
    %v575 = vpop.f32.mrb[0].mxu0
    %576 = vmatprep.mubr.f32.mxu0 0.0
    %577 = vmatmul.mubr.f32.gmra.mrb[0].mxu0 %v449
    %v578 = vpop.f32.mrb[0].mxu0
    %v579 = vadd.f32 %v354, %v578
    %v580 = vpop.f32.mrb[0].mxu0
    %581 = vmatprep.mubr.f32.mxu0 0.0
    %582 = vmatmul.mubr.f32.gmra.mrb[0].mxu0 %v452
    %v583 = vpop.f32.mrb[0].mxu0
    %v584 = vadd.f32 %v359, %v583
    %v585 = vpop.f32.mrb[0].mxu0
    %586 = vmatprep.mubr.f32.mxu0 0.0
    %587 = vmatmul.mubr.f32.gmra.mrb[0].mxu0 %v455
    %v588 = vpop.f32.mrb[0].mxu0
    %v589 = vadd.f32 %v364, %v588
    %v590 = vpop.f32.mrb[0].mxu0
    %591 = vmatprep.mubr.f32.mxu0 0.0
    %592 = vmatmul.mubr.f32.gmra.mrb[0].mxu0 %v458
    %v593 = vpop.f32.mrb[0].mxu0
    %v594 = vadd.f32 %v369, %v593
    %v595 = vpop.f32.mrb[0].mxu0
    %596 = vmatprep.mubr.f32.mxu0 0.0
    %597 = vmatmul.mubr.f32.gmra.mrb[0].mxu0 %v461
    %v598 = vpop.f32.mrb[0].mxu0
    %v599 = vadd.f32 %v374, %v598
    %v600 = vpop.f32.mrb[0].mxu0
    %601 = vmatprep.mubr.f32.mxu0 0.0
    %602 = vmatmul.mubr.f32.gmra.mrb[0].mxu0 %v464
    %v603 = vpop.f32.mrb[0].mxu0
    %v604 = vadd.f32 %v379, %v603
    %v605 = vpop.f32.mrb[0].mxu0
    %606 = vmatprep.mubr.f32.mxu0 0.0
    %607 = vmatmul.mubr.f32.gmra.mrb[0].mxu0 %v467
    %v608 = vpop.f32.mrb[0].mxu0
    %v609 = vadd.f32 %v384, %v608
    %v610 = vpop.f32.mrb[0].mxu0
    %611 = vmatprep.mubr.f32.mxu0 0.0
    %612 = vmatmul.mubr.f32.gmra.mrb[0].mxu0 %v470
    %v613 = vpop.f32.mrb[0].mxu0
    %v614 = vadd.f32 %v389, %v613
    %v615 = vpop.f32.mrb[0].mxu0
    %616 = vdwg.mxu0
    %v617 = vld [vmem:[%s5] sm:$0x1]
    %v619 = vlaneseq
    %v620 = vshrl.u32 %v619, 7
    %v621 = vsub.s32 0, %v620
    %v622 = vrot.slane %v617, %v621
    %v624 = vadd.f32 %v539, %v622
    %v625 = vadd.f32 %v544, %v622
    %v626 = vadd.f32 %v549, %v622
    %v627 = vadd.f32 %v554, %v622
    %v628 = vadd.f32 %v559, %v622
    %v629 = vadd.f32 %v564, %v622
    %v630 = vadd.f32 %v569, %v622
    %v631 = vadd.f32 %v574, %v622
    %v632 = vadd.f32 %v579, %v622
    %v633 = vadd.f32 %v584, %v622
    %v634 = vadd.f32 %v589, %v622
    %v635 = vadd.f32 %v594, %v622
    %v636 = vadd.f32 %v599, %v622
    %v637 = vadd.f32 %v604, %v622
    %v638 = vadd.f32 %v609, %v622
    %v639 = vadd.f32 %v614, %v622
    %v640 = vsub.f32 0.0, %v624
    %v641 = vsub.f32 0.0, %v625
    %v642 = vsub.f32 0.0, %v626
    %v643 = vsub.f32 0.0, %v627
    %v644 = vsub.f32 0.0, %v628
    %v645 = vsub.f32 0.0, %v629
    %v646 = vsub.f32 0.0, %v630
    %v647 = vsub.f32 0.0, %v631
    %v648 = vsub.f32 0.0, %v632
    %v649 = vsub.f32 0.0, %v633
    %v650 = vsub.f32 0.0, %v634
    %v651 = vsub.f32 0.0, %v635
    %v652 = vsub.f32 0.0, %v636
    %v653 = vsub.f32 0.0, %v637
    %v654 = vsub.f32 0.0, %v638
    %v655 = vsub.f32 0.0, %v639
    %v656 = vmul.f32 %v640, 1.442695
    %v657 = vpow.pop %v656
    %v658 = vmul.f32 %v641, 1.442695
    %v659 = vpow.pop %v658
    %v660 = vmul.f32 %v642, 1.442695
    %v661 = vpow.pop %v660
    %v662 = vmul.f32 %v643, 1.442695
    %v663 = vpow.pop %v662
    %v664 = vmul.f32 %v644, 1.442695
    %v665 = vpow.pop %v664
    %v666 = vmul.f32 %v645, 1.442695
    %v667 = vpow.pop %v666
    %v668 = vmul.f32 %v646, 1.442695
    %v669 = vpow.pop %v668
    %v670 = vmul.f32 %v647, 1.442695
    %v671 = vpow.pop %v670
    %v672 = vmul.f32 %v648, 1.442695
    %v673 = vpow.pop %v672
    %v674 = vmul.f32 %v649, 1.442695
    %v675 = vpow.pop %v674
    %v676 = vmul.f32 %v650, 1.442695
    %v677 = vpow.pop %v676
    %v678 = vmul.f32 %v651, 1.442695
    %v679 = vpow.pop %v678
    %v680 = vmul.f32 %v652, 1.442695
    %v681 = vpow.pop %v680
    %v682 = vmul.f32 %v653, 1.442695
    %v683 = vpow.pop %v682
    %v684 = vmul.f32 %v654, 1.442695
    %v685 = vpow.pop %v684
    %v686 = vmul.f32 %v655, 1.442695
    %v687 = vpow.pop %v686
    %v688 = vadd.f32 %v657, 1.0
    %v689 = vadd.f32 %v659, 1.0
    %v690 = vadd.f32 %v661, 1.0
    %v691 = vadd.f32 %v663, 1.0
    %v692 = vadd.f32 %v665, 1.0
    %v693 = vadd.f32 %v667, 1.0
    %v694 = vadd.f32 %v669, 1.0
    %v695 = vadd.f32 %v671, 1.0
    %v696 = vadd.f32 %v673, 1.0
    %v697 = vadd.f32 %v675, 1.0
    %v698 = vadd.f32 %v677, 1.0
    %v699 = vadd.f32 %v679, 1.0
    %v700 = vadd.f32 %v681, 1.0
    %v701 = vadd.f32 %v683, 1.0
    %v702 = vadd.f32 %v685, 1.0
    %v703 = vadd.f32 %v687, 1.0
    %v704 = vrcp.pop %v688
    %v705 = vrcp.pop %v689
    %v706 = vrcp.pop %v690
    %v707 = vrcp.pop %v691
    %v708 = vrcp.pop %v692
    %v709 = vrcp.pop %v693
    %v710 = vrcp.pop %v694
    %v711 = vrcp.pop %v695
    %v712 = vrcp.pop %v696
    %v713 = vrcp.pop %v697
    %v714 = vrcp.pop %v698
    %v715 = vrcp.pop %v699
    %v716 = vrcp.pop %v700
    %v717 = vrcp.pop %v701
    %v718 = vrcp.pop %v702
    %v719 = vrcp.pop %v703
    %v720 = vmul.f32 %v624, %v704
    %v721 = vmul.f32 %v625, %v705
    %v722 = vmul.f32 %v626, %v706
    %v723 = vmul.f32 %v627, %v707
    %v724 = vmul.f32 %v628, %v708
    %v725 = vmul.f32 %v629, %v709
    %v726 = vmul.f32 %v630, %v710
    %v727 = vmul.f32 %v631, %v711
    %v728 = vmul.f32 %v632, %v712
    %v729 = vmul.f32 %v633, %v713
    %v730 = vmul.f32 %v634, %v714
    %v731 = vmul.f32 %v635, %v715
    %v732 = vmul.f32 %v636, %v716
    %v733 = vmul.f32 %v637, %v717
    %v734 = vmul.f32 %v638, %v718
    %v735 = vmul.f32 %v639, %v719
    %v736 = vld [vmem:[#allocation11] sm:$0xff]
    %v737 = vld [vmem:[#allocation11 + $0x8] sm:$0xff]
    %v738 = vld [vmem:[#allocation11 + $0x10] sm:$0xff]
    %v739 = vld [vmem:[#allocation11 + $0x18] sm:$0xff]
    %v740 = vld [vmem:[#allocation12] sm:$0x1]
    %v742 = vlaneseq
    %v743 = vshrl.u32 %v742, 7
    %v744 = vsub.s32 0, %v743
    %v745 = vrot.slane %v740, %v744
    %vm747 = vcmask 261120
    %v749 = vsel %vm747, %v720, 0
    %v752 = vsel %vm747, %v721, 0
    %v755 = vsel %vm747, %v722, 0
    %v758 = vsel %vm747, %v723, 0
    %v761 = vsel %vm747, %v724, 0
    %v764 = vsel %vm747, %v725, 0
    %v767 = vsel %vm747, %v726, 0
    %v770 = vsel %vm747, %v727, 0
    %v773 = vsel %vm747, %v728, 0
    %v776 = vsel %vm747, %v729, 0
    %v779 = vsel %vm747, %v730, 0
    %v782 = vsel %vm747, %v731, 0
    %v785 = vsel %vm747, %v732, 0
    %v788 = vsel %vm747, %v733, 0
    %v791 = vsel %vm747, %v734, 0
    %v794 = vsel %vm747, %v735, 0
    %796 = vmatprep.subr.mxu0 0.0
    %797 = vmatpush1.msra.mxu0 %v736
    %798 = vmatprep.subr.mxu0 0.0
    %799 = vmatpush1.msra.mxu0 %v737
    %800 = vmatprep.subr.mxu0 0.0
    %801 = vmatpush1.msra.mxu0 %v738
    %802 = vmatprep.subr.mxu0 0.0
    %803 = vmatpush1.msra.mxu0 %v739
    %804 = vmatprep.subr.mxu0 0.0
    %805 = vmatpush1.msra.mxu0 0.0
    %806 = vmatprep.subr.mxu0 0.0
    %807 = vmatpush1.msra.mxu0 0.0
    %808 = vmatprep.subr.mxu0 0.0
    %809 = vmatpush1.msra.mxu0 0.0
    %810 = vmatprep.subr.mxu0 0.0
    %811 = vmatpush1.msra.mxu0 0.0
    %812 = vmatprep.subr.mxu0 0.0
    %813 = vmatpush1.msra.mxu0 0.0
    %814 = vmatprep.subr.mxu0 0.0
    %815 = vmatpush1.msra.mxu0 0.0
    %816 = vmatprep.subr.mxu0 0.0
    %817 = vmatpush1.msra.mxu0 0.0
    %818 = vmatprep.subr.mxu0 0.0
    %819 = vmatpush1.msra.mxu0 0.0
    %820 = vmatprep.subr.mxu0 0.0
    %821 = vmatpush1.msra.mxu0 0.0
    %822 = vmatprep.subr.mxu0 0.0
    %823 = vmatpush1.msra.mxu0 0.0
    %824 = vmatprep.subr.mxu0 0.0
    %825 = vmatpush1.msra.mxu0 0.0
    %826 = vmatprep.subr.mxu0 0.0
    %827 = vmatpush1.msra.mxu0 0.0
    %828 = vmatprep.subr.mxu0 0.0
    %829 = vmatpush1.msra.mxu0 0.0
    %830 = vmatprep.subr.mxu0 0.0
    %831 = vmatpush1.msra.mxu0 0.0
    %832 = vmatprep.subr.mxu0 0.0
    %833 = vmatpush1.msra.mxu0 0.0
    %834 = vmatprep.subr.mxu0 0.0
    %835 = vmatpush1.msra.mxu0 0.0
    %836 = vmatprep.subr.mxu0 0.0
    %837 = vmatpush1.msra.mxu0 0.0
    %838 = vmatprep.subr.mxu0 0.0
    %839 = vmatpush1.msra.mxu0 0.0
    %840 = vmatprep.subr.mxu0 0.0
    %841 = vmatpush1.msra.mxu0 0.0
    %842 = vmatprep.subr.mxu0 0.0
    %843 = vmatpush1.msra.mxu0 0.0
    %844 = vmatprep.subr.mxu0 0.0
    %845 = vmatpush1.msra.mxu0 0.0
    %846 = vmatprep.subr.mxu0 0.0
    %847 = vmatpush1.msra.mxu0 0.0
    %848 = vmatprep.subr.mxu0 0.0
    %849 = vmatpush1.msra.mxu0 0.0
    %850 = vmatprep.subr.mxu0 0.0
    %851 = vmatpush1.msra.mxu0 0.0
    %852 = vmatprep.subr.mxu0 0.0
    %853 = vmatpush1.msra.mxu0 0.0
    %854 = vmatprep.subr.mxu0 0.0
    %855 = vmatpush1.msra.mxu0 0.0
    %856 = vmatprep.subr.mxu0 0.0
    %857 = vmatpush1.msra.mxu0 0.0
    %858 = vmatprep.subr.mxu0 0.0
    %859 = vmatpush1.msra.mxu0 0.0
    %860 = vmatprep.mubr.f32.mxu0 0.0
    %861 = vmatmul.mubr.f32.gmra.mrb[0].mxu0 %v749
    %v862 = vpop.f32.mrb[0].mxu0
    %v863 = vadd.f32 %v745, %v862
    %v864 = vpop.f32.mrb[0].mxu0
    %865 = vmatprep.mubr.f32.mxu0 0.0
    %866 = vmatmul.mubr.f32.gmra.mrb[0].mxu0 %v752
    %v867 = vpop.f32.mrb[0].mxu0
    %v868 = vadd.f32 %v745, %v867
    %v869 = vpop.f32.mrb[0].mxu0
    %870 = vmatprep.mubr.f32.mxu0 0.0
    %871 = vmatmul.mubr.f32.gmra.mrb[0].mxu0 %v755
    %v872 = vpop.f32.mrb[0].mxu0
    %v873 = vadd.f32 %v745, %v872
    %v874 = vpop.f32.mrb[0].mxu0
    %875 = vmatprep.mubr.f32.mxu0 0.0
    %876 = vmatmul.mubr.f32.gmra.mrb[0].mxu0 %v758
    %v877 = vpop.f32.mrb[0].mxu0
    %v878 = vadd.f32 %v745, %v877
    %v879 = vpop.f32.mrb[0].mxu0
    %880 = vmatprep.mubr.f32.mxu0 0.0
    %881 = vmatmul.mubr.f32.gmra.mrb[0].mxu0 %v761
    %v882 = vpop.f32.mrb[0].mxu0
    %v883 = vadd.f32 %v745, %v882
    %v884 = vpop.f32.mrb[0].mxu0
    %885 = vmatprep.mubr.f32.mxu0 0.0
    %886 = vmatmul.mubr.f32.gmra.mrb[0].mxu0 %v764
    %v887 = vpop.f32.mrb[0].mxu0
    %v888 = vadd.f32 %v745, %v887
    %v889 = vpop.f32.mrb[0].mxu0
    %890 = vmatprep.mubr.f32.mxu0 0.0
    %891 = vmatmul.mubr.f32.gmra.mrb[0].mxu0 %v767
    %v892 = vpop.f32.mrb[0].mxu0
    %v893 = vadd.f32 %v745, %v892
    %v894 = vpop.f32.mrb[0].mxu0
    %895 = vmatprep.mubr.f32.mxu0 0.0
    %896 = vmatmul.mubr.f32.gmra.mrb[0].mxu0 %v770
    %v897 = vpop.f32.mrb[0].mxu0
    %v898 = vadd.f32 %v745, %v897
    %v899 = vpop.f32.mrb[0].mxu0
    %900 = vmatprep.mubr.f32.mxu0 0.0
    %901 = vmatmul.mubr.f32.gmra.mrb[0].mxu0 %v773
    %v902 = vpop.f32.mrb[0].mxu0
    %v903 = vadd.f32 %v745, %v902
    %v904 = vpop.f32.mrb[0].mxu0
    %905 = vmatprep.mubr.f32.mxu0 0.0
    %906 = vmatmul.mubr.f32.gmra.mrb[0].mxu0 %v776
    %v907 = vpop.f32.mrb[0].mxu0
    %v908 = vadd.f32 %v745, %v907
    %v909 = vpop.f32.mrb[0].mxu0
    %910 = vmatprep.mubr.f32.mxu0 0.0
    %911 = vmatmul.mubr.f32.gmra.mrb[0].mxu0 %v779
    %v912 = vpop.f32.mrb[0].mxu0
    %v913 = vadd.f32 %v745, %v912
    %v914 = vpop.f32.mrb[0].mxu0
    %915 = vmatprep.mubr.f32.mxu0 0.0
    %916 = vmatmul.mubr.f32.gmra.mrb[0].mxu0 %v782
    %v917 = vpop.f32.mrb[0].mxu0
    %v918 = vadd.f32 %v745, %v917
    %v919 = vpop.f32.mrb[0].mxu0
    %920 = vmatprep.mubr.f32.mxu0 0.0
    %921 = vmatmul.mubr.f32.gmra.mrb[0].mxu0 %v785
    %v922 = vpop.f32.mrb[0].mxu0
    %v923 = vadd.f32 %v745, %v922
    %v924 = vpop.f32.mrb[0].mxu0
    %925 = vmatprep.mubr.f32.mxu0 0.0
    %926 = vmatmul.mubr.f32.gmra.mrb[0].mxu0 %v788
    %v927 = vpop.f32.mrb[0].mxu0
    %v928 = vadd.f32 %v745, %v927
    %v929 = vpop.f32.mrb[0].mxu0
    %930 = vmatprep.mubr.f32.mxu0 0.0
    %931 = vmatmul.mubr.f32.gmra.mrb[0].mxu0 %v791
    %v932 = vpop.f32.mrb[0].mxu0
    %v933 = vadd.f32 %v745, %v932
    %v934 = vpop.f32.mrb[0].mxu0
    %935 = vmatprep.mubr.f32.mxu0 0.0
    %936 = vmatmul.mubr.f32.gmra.mrb[0].mxu0 %v794
    %v937 = vpop.f32.mrb[0].mxu0
    %v938 = vadd.f32 %v745, %v937
    %v939 = vpop.f32.mrb[0].mxu0
    %940 = vdwg.mxu0
    %v941 = vsub.f32 0.0, %v863
    %v942 = vsub.f32 0.0, %v868
    %v943 = vsub.f32 0.0, %v873
    %v944 = vsub.f32 0.0, %v878
    %v945 = vsub.f32 0.0, %v883
    %v946 = vsub.f32 0.0, %v888
    %v947 = vsub.f32 0.0, %v893
    %v948 = vsub.f32 0.0, %v898
    %v949 = vsub.f32 0.0, %v903
    %v950 = vsub.f32 0.0, %v908
    %v951 = vsub.f32 0.0, %v913
    %v952 = vsub.f32 0.0, %v918
    %v953 = vsub.f32 0.0, %v923
    %v954 = vsub.f32 0.0, %v928
    %v955 = vsub.f32 0.0, %v933
    %v956 = vsub.f32 0.0, %v938
    %v957 = vmul.f32 %v941, 1.442695
    %v958 = vpow.pop %v957
    %v959 = vmul.f32 %v942, 1.442695
    %v960 = vpow.pop %v959
    %v961 = vmul.f32 %v943, 1.442695
    %v962 = vpow.pop %v961
    %v963 = vmul.f32 %v944, 1.442695
    %v964 = vpow.pop %v963
    %v965 = vmul.f32 %v945, 1.442695
    %v966 = vpow.pop %v965
    %v967 = vmul.f32 %v946, 1.442695
    %v968 = vpow.pop %v967
    %v969 = vmul.f32 %v947, 1.442695
    %v970 = vpow.pop %v969
    %v971 = vmul.f32 %v948, 1.442695
    %v972 = vpow.pop %v971
    %v973 = vmul.f32 %v949, 1.442695
    %v974 = vpow.pop %v973
    %v975 = vmul.f32 %v950, 1.442695
    %v976 = vpow.pop %v975
    %v977 = vmul.f32 %v951, 1.442695
    %v978 = vpow.pop %v977
    %v979 = vmul.f32 %v952, 1.442695
    %v980 = vpow.pop %v979
    %v981 = vmul.f32 %v953, 1.442695
    %v982 = vpow.pop %v981
    %v983 = vmul.f32 %v954, 1.442695
    %v984 = vpow.pop %v983
    %v985 = vmul.f32 %v955, 1.442695
    %v986 = vpow.pop %v985
    %v987 = vmul.f32 %v956, 1.442695
    %v988 = vpow.pop %v987
    %v989 = vadd.f32 %v958, 1.0
    %v990 = vadd.f32 %v960, 1.0
    %v991 = vadd.f32 %v962, 1.0
    %v992 = vadd.f32 %v964, 1.0
    %v993 = vadd.f32 %v966, 1.0
    %v994 = vadd.f32 %v968, 1.0
    %v995 = vadd.f32 %v970, 1.0
    %v996 = vadd.f32 %v972, 1.0
    %v997 = vadd.f32 %v974, 1.0
    %v998 = vadd.f32 %v976, 1.0
    %v999 = vadd.f32 %v978, 1.0
    %v1000 = vadd.f32 %v980, 1.0
    %v1001 = vadd.f32 %v982, 1.0
    %v1002 = vadd.f32 %v984, 1.0
    %v1003 = vadd.f32 %v986, 1.0
    %v1004 = vadd.f32 %v988, 1.0
    %v1005 = vrcp.pop %v989
    %v1006 = vrcp.pop %v990
    %v1007 = vrcp.pop %v991
    %v1008 = vrcp.pop %v992
    %v1009 = vrcp.pop %v993
    %v1010 = vrcp.pop %v994
    %v1011 = vrcp.pop %v995
    %v1012 = vrcp.pop %v996
    %v1013 = vrcp.pop %v997
    %v1014 = vrcp.pop %v998
    %v1015 = vrcp.pop %v999
    %v1016 = vrcp.pop %v1000
    %v1017 = vrcp.pop %v1001
    %v1018 = vrcp.pop %v1002
    %v1019 = vrcp.pop %v1003
    %v1020 = vrcp.pop %v1004
    %v1021 = vmul.f32 %v863, %v1005
    %v1022 = vmul.f32 %v868, %v1006
    %v1023 = vmul.f32 %v873, %v1007
    %v1024 = vmul.f32 %v878, %v1008
    %v1025 = vmul.f32 %v883, %v1009
    %v1026 = vmul.f32 %v888, %v1010
    %v1027 = vmul.f32 %v893, %v1011
    %v1028 = vmul.f32 %v898, %v1012
    %v1029 = vmul.f32 %v903, %v1013
    %v1030 = vmul.f32 %v908, %v1014
    %v1031 = vmul.f32 %v913, %v1015
    %v1032 = vmul.f32 %v918, %v1016
    %v1033 = vmul.f32 %v923, %v1017
    %v1034 = vmul.f32 %v928, %v1018
    %v1035 = vmul.f32 %v933, %v1019
    %v1036 = vmul.f32 %v938, %v1020
    %1037 = vst.msk [vmem:[%s14] sm:$0xff] %vm747, %v1021
    %1038 = vst.msk [vmem:[%s14 + $0x8] sm:$0xff] %vm747, %v1022
    %1039 = vst.msk [vmem:[%s14 + $0x10] sm:$0xff] %vm747, %v1023
    %1040 = vst.msk [vmem:[%s14 + $0x18] sm:$0xff] %vm747, %v1024
    %1041 = vst.msk [vmem:[%s14 + $0x20] sm:$0xff] %vm747, %v1025
    %1042 = vst.msk [vmem:[%s14 + $0x28] sm:$0xff] %vm747, %v1026
    %1043 = vst.msk [vmem:[%s14 + $0x30] sm:$0xff] %vm747, %v1027
    %1044 = vst.msk [vmem:[%s14 + $0x38] sm:$0xff] %vm747, %v1028
    %1045 = vst.msk [vmem:[%s14 + $0x40] sm:$0xff] %vm747, %v1029
    %1046 = vst.msk [vmem:[%s14 + $0x48] sm:$0xff] %vm747, %v1030
    %1047 = vst.msk [vmem:[%s14 + $0x50] sm:$0xff] %vm747, %v1031
    %1048 = vst.msk [vmem:[%s14 + $0x58] sm:$0xff] %vm747, %v1032
    %1049 = vst.msk [vmem:[%s14 + $0x60] sm:$0xff] %vm747, %v1033
    %1050 = vst.msk [vmem:[%s14 + $0x68] sm:$0xff] %vm747, %v1034
    %1051 = vst.msk [vmem:[%s14 + $0x70] sm:$0xff] %vm747, %v1035
    %1052 = vst.msk [vmem:[%s14 + $0x78] sm:$0xff] %vm747, %v1036
    %1053 = vmatprep.subr.mxu0 0.0
    %1054 = vmatpush1.msra.mxu0 %v1021
    %1055 = vmatprep.subr.mxu0 0.0
    %1056 = vmatpush1.msra.mxu0 %v1022
    %1057 = vmatprep.subr.mxu0 0.0
    %1058 = vmatpush1.msra.mxu0 %v1023
    %1059 = vmatprep.subr.mxu0 0.0
    %1060 = vmatpush1.msra.mxu0 %v1024
    %1061 = vmatprep.subr.mxu0 0.0
    %1062 = vmatpush1.msra.mxu0 %v1025
    %1063 = vmatprep.subr.mxu0 0.0
    %1064 = vmatpush1.msra.mxu0 %v1026
    %1065 = vmatprep.subr.mxu0 0.0
    %1066 = vmatpush1.msra.mxu0 %v1027
    %1067 = vmatprep.subr.mxu0 0.0
    %1068 = vmatpush1.msra.mxu0 %v1028
    %1069 = vmatprep.subr.mxu0 0.0
    %1070 = vmatpush1.msra.mxu0 %v1029
    %1071 = vmatprep.subr.mxu0 0.0
    %1072 = vmatpush1.msra.mxu0 %v1030
    %1073 = vmatprep.subr.mxu0 0.0
    %1074 = vmatpush1.msra.mxu0 %v1031
    %1075 = vmatprep.subr.mxu0 0.0
    %1076 = vmatpush1.msra.mxu0 %v1032
    %1077 = vmatprep.subr.mxu0 0.0
    %1078 = vmatpush1.msra.mxu0 %v1033
    %1079 = vmatprep.subr.mxu0 0.0
    %1080 = vmatpush1.msra.mxu0 %v1034
    %1081 = vmatprep.subr.mxu0 0.0
    %1082 = vmatpush1.msra.mxu0 %v1035
    %1083 = vmatprep.subr.mxu0 0.0
    %1084 = vmatpush1.msra.mxu0 %v1036
    %1085 = vmatprep.subr.mxu0 0.0
    %1086 = vmatpush1.msra.mxu0 0.0
    %1087 = vmatprep.subr.mxu0 0.0
    %1088 = vmatpush1.msra.mxu0 0.0
    %1089 = vmatprep.subr.mxu0 0.0
    %1090 = vmatpush1.msra.mxu0 0.0
    %1091 = vmatprep.subr.mxu0 0.0
    %1092 = vmatpush1.msra.mxu0 0.0
    %1093 = vmatprep.subr.mxu0 0.0
    %1094 = vmatpush1.msra.mxu0 0.0
    %1095 = vmatprep.subr.mxu0 0.0
    %1096 = vmatpush1.msra.mxu0 0.0
    %1097 = vmatprep.subr.mxu0 0.0
    %1098 = vmatpush1.msra.mxu0 0.0
    %1099 = vmatprep.subr.mxu0 0.0
    %1100 = vmatpush1.msra.mxu0 0.0
    %1101 = vmatprep.subr.mxu0 0.0
    %1102 = vmatpush1.msra.mxu0 0.0
    %1103 = vmatprep.subr.mxu0 0.0
    %1104 = vmatpush1.msra.mxu0 0.0
    %1105 = vmatprep.subr.mxu0 0.0
    %1106 = vmatpush1.msra.mxu0 0.0
    %1107 = vmatprep.subr.mxu0 0.0
    %1108 = vmatpush1.msra.mxu0 0.0
    %1109 = vmatprep.subr.mxu0 0.0
    %1110 = vmatpush1.msra.mxu0 0.0
    %1111 = vmatprep.subr.mxu0 0.0
    %1112 = vmatpush1.msra.mxu0 0.0
    %1113 = vmatprep.subr.mxu0 0.0
    %1114 = vmatpush1.msra.mxu0 0.0
    %1115 = vmatprep.subr.mxu0 0.0
    %1116 = vmatpush1.msra.mxu0 0.0
    %1117 = vmatprep.mubr.f32.mxu0 0.0
    %1118 = vmatmul.mubr.f32.gmra.mrb[0].mxu0 %v156
    %v1119 = vpop.f32.mrb[0].mxu0
    %v1120 = vadd.f32 0.0, %v1119
    %v1121 = vpop.f32.mrb[0].mxu0
    %1122 = vdwg.mxu0
    %p1123 = scmp.eq.s32.totalorder 0, 0
    // Predicated region
    $region86: #{tpu_custom_call.1} parent=1 // pred_check
      %p1124 = pneg %p1123
    $region87: #{tpu_custom_call.1} parent=1 // pred_check_branch
      %1126 = sbr.rel (%p1124) target = $region89
    $region88: #{tpu_custom_call.1} parent=1 // pred_region
      %1127 = vst.msk [vmem:[#allocation2] sm:$0xff] %vm747, %v1120
    $region89: #{tpu_custom_call.1} parent=1 // pred_fallthru
      _
    %p1128 = scmp.ne.s32.totalorder 0, 0
    // Predicated region
    $region90: #{tpu_custom_call.1} parent=1 // pred_check
      %p1129 = pneg %p1128
    $region91: #{tpu_custom_call.1} parent=1 // pred_check_branch
      %1131 = sbr.rel (%p1129) target = $region93
    $region92: #{tpu_custom_call.1} parent=1 // pred_region
      %v1132 = vld [vmem:[#allocation2] sm:$0xff]
      %v1133 = vadd.f32 %v1132, %v1120
      %1134 = vst.msk [vmem:[#allocation2] sm:$0xff] %vm747, %v1133
    $region93: #{tpu_custom_call.1} parent=1 // pred_fallthru
      _
    // Predicated region
    $region94: #{tpu_custom_call.1} parent=1 // pred_check
      %p1135 = pneg %p1123
    $region95: #{tpu_custom_call.1} parent=1 // pred_check_branch
      %1137 = sbr.rel (%p1135) target = $region97
    $region96: #{tpu_custom_call.1} parent=1 // pred_region
      %v1138 = vld [vmem:[#allocation2] sm:$0xff]
      %v1139 = vld [vmem:[#allocation9] sm:$0xff]
      %v1140 = vld [vmem:[#allocation14] sm:$0xff]
      %v1141 = vld [vmem:[#allocation14 + $0x8] sm:$0xff]
      %v1142 = vld [vmem:[#allocation14 + $0x10] sm:$0xff]
      %v1143 = vld [vmem:[#allocation14 + $0x18] sm:$0xff]
      %v1144 = vld [vmem:[%s9] sm:$0xff]
      %v1145 = vld [vmem:[%s9 + $0x8] sm:$0xff]
      %v1146 = vld [vmem:[%s9 + $0x10] sm:$0xff]
      %v1147 = vld [vmem:[%s9 + $0x18] sm:$0xff]
      %v1149 = vsel %vm747, %v1138, 0
      %1151 = vmatprep.subr.mxu0 0.0
      %1152 = vmatpush1.msra.mxu0 %v1144
      %1153 = vmatprep.subr.mxu0 0.0
      %1154 = vmatpush1.msra.mxu0 %v1145
      %1155 = vmatprep.subr.mxu0 0.0
      %1156 = vmatpush1.msra.mxu0 %v1146
      %1157 = vmatprep.subr.mxu0 0.0
      %1158 = vmatpush1.msra.mxu0 %v1147
      %1159 = vmatprep.subr.mxu0 0.0
      %1160 = vmatpush1.msra.mxu0 0.0
      %1161 = vmatprep.subr.mxu0 0.0
      %1162 = vmatpush1.msra.mxu0 0.0
      %1163 = vmatprep.subr.mxu0 0.0
      %1164 = vmatpush1.msra.mxu0 0.0
      %1165 = vmatprep.subr.mxu0 0.0
      %1166 = vmatpush1.msra.mxu0 0.0
      %1167 = vmatprep.subr.mxu0 0.0
      %1168 = vmatpush1.msra.mxu0 0.0
      %1169 = vmatprep.subr.mxu0 0.0
      %1170 = vmatpush1.msra.mxu0 0.0
      %1171 = vmatprep.subr.mxu0 0.0
      %1172 = vmatpush1.msra.mxu0 0.0
      %1173 = vmatprep.subr.mxu0 0.0
      %1174 = vmatpush1.msra.mxu0 0.0
      %1175 = vmatprep.subr.mxu0 0.0
      %1176 = vmatpush1.msra.mxu0 0.0
      %1177 = vmatprep.subr.mxu0 0.0
      %1178 = vmatpush1.msra.mxu0 0.0
      %1179 = vmatprep.subr.mxu0 0.0
      %1180 = vmatpush1.msra.mxu0 0.0
      %1181 = vmatprep.subr.mxu0 0.0
      %1182 = vmatpush1.msra.mxu0 0.0
      %1183 = vmatprep.subr.mxu0 0.0
      %1184 = vmatpush1.msra.mxu0 0.0
      %1185 = vmatprep.subr.mxu0 0.0
      %1186 = vmatpush1.msra.mxu0 0.0
      %1187 = vmatprep.subr.mxu0 0.0
      %1188 = vmatpush1.msra.mxu0 0.0
      %1189 = vmatprep.subr.mxu0 0.0
      %1190 = vmatpush1.msra.mxu0 0.0
      %1191 = vmatprep.subr.mxu0 0.0
      %1192 = vmatpush1.msra.mxu0 0.0
      %1193 = vmatprep.subr.mxu0 0.0
      %1194 = vmatpush1.msra.mxu0 0.0
      %1195 = vmatprep.subr.mxu0 0.0
      %1196 = vmatpush1.msra.mxu0 0.0
      %1197 = vmatprep.subr.mxu0 0.0
      %1198 = vmatpush1.msra.mxu0 0.0
      %1199 = vmatprep.subr.mxu0 0.0
      %1200 = vmatpush1.msra.mxu0 0.0
      %1201 = vmatprep.subr.mxu0 0.0
      %1202 = vmatpush1.msra.mxu0 0.0
      %1203 = vmatprep.subr.mxu0 0.0
      %1204 = vmatpush1.msra.mxu0 0.0
      %1205 = vmatprep.subr.mxu0 0.0
      %1206 = vmatpush1.msra.mxu0 0.0
      %1207 = vmatprep.subr.mxu0 0.0
      %1208 = vmatpush1.msra.mxu0 0.0
      %1209 = vmatprep.subr.mxu0 0.0
      %1210 = vmatpush1.msra.mxu0 0.0
      %1211 = vmatprep.subr.mxu0 0.0
      %1212 = vmatpush1.msra.mxu0 0.0
      %1213 = vmatprep.subr.mxu0 0.0
      %1214 = vmatpush1.msra.mxu0 0.0
      %1215 = vmatprep.mubr.f32.mxu0 0.0
      %1216 = vmatmul.mubr.f32.gmra.mrb[0].mxu0 %v1149
      %v1217 = vpop.f32.mrb[0].mxu0
      %v1218 = vadd.f32 0.0, %v1217
      %v1219 = vpop.f32.mrb[0].mxu0
      %1220 = vdwg.mxu0
      %v1222 = vsel %vm747, %v1139, 0
      %1224 = vmatprep.subr.mxu0 0.0
      %1225 = vmatpush1.msra.mxu0 %v1140
      %1226 = vmatprep.subr.mxu0 0.0
      %1227 = vmatpush1.msra.mxu0 %v1141
      %1228 = vmatprep.subr.mxu0 0.0
      %1229 = vmatpush1.msra.mxu0 %v1142
      %1230 = vmatprep.subr.mxu0 0.0
      %1231 = vmatpush1.msra.mxu0 %v1143
      %1232 = vmatprep.subr.mxu0 0.0
      %1233 = vmatpush1.msra.mxu0 0.0
      %1234 = vmatprep.subr.mxu0 0.0
      %1235 = vmatpush1.msra.mxu0 0.0
      %1236 = vmatprep.subr.mxu0 0.0
      %1237 = vmatpush1.msra.mxu0 0.0
      %1238 = vmatprep.subr.mxu0 0.0
      %1239 = vmatpush1.msra.mxu0 0.0
      %1240 = vmatprep.subr.mxu0 0.0
      %1241 = vmatpush1.msra.mxu0 0.0
      %1242 = vmatprep.subr.mxu0 0.0
      %1243 = vmatpush1.msra.mxu0 0.0
      %1244 = vmatprep.subr.mxu0 0.0
      %1245 = vmatpush1.msra.mxu0 0.0
      %1246 = vmatprep.subr.mxu0 0.0
      %1247 = vmatpush1.msra.mxu0 0.0
      %1248 = vmatprep.subr.mxu0 0.0
      %1249 = vmatpush1.msra.mxu0 0.0
      %1250 = vmatprep.subr.mxu0 0.0
      %1251 = vmatpush1.msra.mxu0 0.0
      %1252 = vmatprep.subr.mxu0 0.0
      %1253 = vmatpush1.msra.mxu0 0.0
      %1254 = vmatprep.subr.mxu0 0.0
      %1255 = vmatpush1.msra.mxu0 0.0
      %1256 = vmatprep.subr.mxu0 0.0
      %1257 = vmatpush1.msra.mxu0 0.0
      %1258 = vmatprep.subr.mxu0 0.0
      %1259 = vmatpush1.msra.mxu0 0.0
      %1260 = vmatprep.subr.mxu0 0.0
      %1261 = vmatpush1.msra.mxu0 0.0
      %1262 = vmatprep.subr.mxu0 0.0
      %1263 = vmatpush1.msra.mxu0 0.0
      %1264 = vmatprep.subr.mxu0 0.0
      %1265 = vmatpush1.msra.mxu0 0.0
      %1266 = vmatprep.subr.mxu0 0.0
      %1267 = vmatpush1.msra.mxu0 0.0
      %1268 = vmatprep.subr.mxu0 0.0
      %1269 = vmatpush1.msra.mxu0 0.0
      %1270 = vmatprep.subr.mxu0 0.0
      %1271 = vmatpush1.msra.mxu0 0.0
      %1272 = vmatprep.subr.mxu0 0.0
      %1273 = vmatpush1.msra.mxu0 0.0
      %1274 = vmatprep.subr.mxu0 0.0
      %1275 = vmatpush1.msra.mxu0 0.0
      %1276 = vmatprep.subr.mxu0 0.0
      %1277 = vmatpush1.msra.mxu0 0.0
      %1278 = vmatprep.subr.mxu0 0.0
      %1279 = vmatpush1.msra.mxu0 0.0
      %1280 = vmatprep.subr.mxu0 0.0
      %1281 = vmatpush1.msra.mxu0 0.0
      %1282 = vmatprep.subr.mxu0 0.0
      %1283 = vmatpush1.msra.mxu0 0.0
      %1284 = vmatprep.subr.mxu0 0.0
      %1285 = vmatpush1.msra.mxu0 0.0
      %1286 = vmatprep.subr.mxu0 0.0
      %1287 = vmatpush1.msra.mxu0 0.0
      %1288 = vmatprep.mubr.f32.mxu0 0.0
      %1289 = vmatmul.mubr.f32.gmra.mrb[0].mxu0 %v1222
      %v1290 = vpop.f32.mrb[0].mxu0
      %v1291 = vadd.f32 %v1218, %v1290
      %v1292 = vpop.f32.mrb[0].mxu0
      %1293 = vdwg.mxu0
      %v1294 = vld [vmem:[%s10] sm:$0x1]
      %v1296 = vlaneseq
      %v1297 = vshrl.u32 %v1296, 7
      %v1298 = vsub.s32 0, %v1297
      %v1299 = vrot.slane %v1294, %v1298
      %v1301 = vadd.f32 %v1291, %v1299
      %v1302 = vsub.f32 0.0, %v1301
      %v1303 = vmul.f32 %v1302, 1.442695
      %v1304 = vpow.pop %v1303
      %v1305 = vadd.f32 %v1304, 1.0
      %v1306 = vrcp.pop %v1305
      %v1307 = vmul.f32 %v1301, %v1306
      %v1308 = vld [vmem:[#allocation15] sm:$0xff]
      %v1309 = vld [vmem:[#allocation15 + $0x8] sm:$0xff]
      %v1310 = vld [vmem:[#allocation15 + $0x10] sm:$0xff]
      %v1311 = vld [vmem:[#allocation15 + $0x18] sm:$0xff]
      %v1312 = vld [vmem:[%s12] sm:$0x1]
      %v1314 = vlaneseq
      %v1315 = vshrl.u32 %v1314, 7
      %v1316 = vsub.s32 0, %v1315
      %v1317 = vrot.slane %v1312, %v1316
      %v1320 = vsel %vm747, %v1307, 0
      %1322 = vmatprep.subr.mxu0 0.0
      %1323 = vmatpush1.msra.mxu0 %v1308
      %1324 = vmatprep.subr.mxu0 0.0
      %1325 = vmatpush1.msra.mxu0 %v1309
      %1326 = vmatprep.subr.mxu0 0.0
      %1327 = vmatpush1.msra.mxu0 %v1310
      %1328 = vmatprep.subr.mxu0 0.0
      %1329 = vmatpush1.msra.mxu0 %v1311
      %1330 = vmatprep.subr.mxu0 0.0
      %1331 = vmatpush1.msra.mxu0 0.0
      %1332 = vmatprep.subr.mxu0 0.0
      %1333 = vmatpush1.msra.mxu0 0.0
      %1334 = vmatprep.subr.mxu0 0.0
      %1335 = vmatpush1.msra.mxu0 0.0
      %1336 = vmatprep.subr.mxu0 0.0
      %1337 = vmatpush1.msra.mxu0 0.0
      %1338 = vmatprep.subr.mxu0 0.0
      %1339 = vmatpush1.msra.mxu0 0.0
      %1340 = vmatprep.subr.mxu0 0.0
      %1341 = vmatpush1.msra.mxu0 0.0
      %1342 = vmatprep.subr.mxu0 0.0
      %1343 = vmatpush1.msra.mxu0 0.0
      %1344 = vmatprep.subr.mxu0 0.0
      %1345 = vmatpush1.msra.mxu0 0.0
      %1346 = vmatprep.subr.mxu0 0.0
      %1347 = vmatpush1.msra.mxu0 0.0
      %1348 = vmatprep.subr.mxu0 0.0
      %1349 = vmatpush1.msra.mxu0 0.0
      %1350 = vmatprep.subr.mxu0 0.0
      %1351 = vmatpush1.msra.mxu0 0.0
      %1352 = vmatprep.subr.mxu0 0.0
      %1353 = vmatpush1.msra.mxu0 0.0
      %1354 = vmatprep.subr.mxu0 0.0
      %1355 = vmatpush1.msra.mxu0 0.0
      %1356 = vmatprep.subr.mxu0 0.0
      %1357 = vmatpush1.msra.mxu0 0.0
      %1358 = vmatprep.subr.mxu0 0.0
      %1359 = vmatpush1.msra.mxu0 0.0
      %1360 = vmatprep.subr.mxu0 0.0
      %1361 = vmatpush1.msra.mxu0 0.0
      %1362 = vmatprep.subr.mxu0 0.0
      %1363 = vmatpush1.msra.mxu0 0.0
      %1364 = vmatprep.subr.mxu0 0.0
      %1365 = vmatpush1.msra.mxu0 0.0
      %1366 = vmatprep.subr.mxu0 0.0
      %1367 = vmatpush1.msra.mxu0 0.0
      %1368 = vmatprep.subr.mxu0 0.0
      %1369 = vmatpush1.msra.mxu0 0.0
      %1370 = vmatprep.subr.mxu0 0.0
      %1371 = vmatpush1.msra.mxu0 0.0
      %1372 = vmatprep.subr.mxu0 0.0
      %1373 = vmatpush1.msra.mxu0 0.0
      %1374 = vmatprep.subr.mxu0 0.0
      %1375 = vmatpush1.msra.mxu0 0.0
      %1376 = vmatprep.subr.mxu0 0.0
      %1377 = vmatpush1.msra.mxu0 0.0
      %1378 = vmatprep.subr.mxu0 0.0
      %1379 = vmatpush1.msra.mxu0 0.0
      %1380 = vmatprep.subr.mxu0 0.0
      %1381 = vmatpush1.msra.mxu0 0.0
      %1382 = vmatprep.subr.mxu0 0.0
      %1383 = vmatpush1.msra.mxu0 0.0
      %1384 = vmatprep.subr.mxu0 0.0
      %1385 = vmatpush1.msra.mxu0 0.0
      %1386 = vmatprep.mubr.f32.mxu0 0.0
      %1387 = vmatmul.mubr.f32.gmra.mrb[0].mxu0 %v1320
      %v1388 = vpop.f32.mrb[0].mxu0
      %v1389 = vadd.f32 %v1317, %v1388
      %v1390 = vpop.f32.mrb[0].mxu0
      %1391 = vdwg.mxu0
      %v1392 = vadd.f32 %v1139, %v1389
      %1393 = vst.msk [vmem:[#allocation17] sm:$0xff] %vm747, %v1392
    $region97: #{tpu_custom_call.1} parent=1 // pred_fallthru
      _
    // Predicated region
    $region98: #{tpu_custom_call.1} parent=1 // pred_check
      _
    $region99: #{tpu_custom_call.1} parent=1 // pred_check_branch
      %1395 = sbr.rel (0) target = $region101
    $region100: #{tpu_custom_call.1} parent=1 // pred_region
      %s1397 = ssub.s32 128, 128
      %1398 = vsyncadd [#allocation5], %s1397
      %s1400 = sshll.u32 [#allocation17], 4
      %s1401 = int_to_ptr.vmem [resolvable:$true] %s1400
      %1403 = dma.vmem_to_hbm [thread:$0]  %s1401, 128, %s13, [#allocation5]
    $region101: #{tpu_custom_call.1} parent=1 // pred_fallthru
      _
    // Predicated region
    $region102: #{tpu_custom_call.1} parent=1 // pred_check
      _
    $region103: #{tpu_custom_call.1} parent=1 // pred_check_branch
      %1405 = sbr.rel (0) target = $region105
    $region104: #{tpu_custom_call.1} parent=1 // pred_region
      _
    $region105: #{tpu_custom_call.1} parent=1 // pred_fallthru
      _
    // Predicated region
    $region106: #{tpu_custom_call.1} parent=1 // pred_check
      _
    $region107: #{tpu_custom_call.1} parent=1 // pred_check_branch
      %1407 = sbr.rel (0) target = $region109
    $region108: #{tpu_custom_call.1} parent=1 // pred_region
      %1408 = dma.done [#allocation5], 128
    $region109: #{tpu_custom_call.1} parent=1 // pred_fallthru
      _
    // Predicated region
    $region110: #{tpu_custom_call.1} parent=1 // pred_check
      _
    $region111: #{tpu_custom_call.1} parent=1 // pred_check_branch
      %1410 = sbr.rel (0) target = $region113
    $region112: #{tpu_custom_call.1} parent=1 // pred_region
      _
    $region113: #{tpu_custom_call.1} parent=1 // pred_fallthru
      _
    %1411 = vsyncpa [#allocation4], 1
    %1412 = vsyncpa [#allocation7], 1
    %1413 = vsyncpa [#allocation10], 1
    %1414 = vsyncpa [#allocation13], 1
    %1415 = vsyncpa [#allocation16], 1
    %1416 = vsyncpa [#allocation5], 1

</llo_original>
